<compile_context>
chip_gen: v6e
topology: v6e:2x2x1
jax: 0.10.0
libtpu: 0.0.40
codegen_flags: <defaults>
</compile_context>

<pallas_src>
import math

import jax
import jax.numpy as jnp
from jax.experimental import pallas as pl
from jax.experimental.pallas import tpu as pltpu

PAD = 128  # lane-align hidden/code feature dims to the 128-lane vreg width


def encoder_kernel(x_ref, w_in_ref, g_in_ref, b_in_ref,
                   w_h_ref, g_h_ref, b_h_ref,
                   w_c_ref, b_c_ref, out_ref):
    """Whole-encoder forward in one kernel invocation (all operands in VMEM)."""
    eps = jnp.float32(1e-5)
    batch = x_ref.shape[0]
    inv_b = jnp.float32(1.0 / batch)
    # ones-row for MXU-side batch reductions (hoisted once, reused by every BN)
    ones_row = jnp.ones((1, batch), jnp.float32)

    def bn_relu(pre, gamma, beta):
        # One-pass batch moments on the MXU (keeps XLU/VPU off the critical path):
        #   sum = 1s @ pre ; sumsq = 1s @ (pre*pre) ; var = E[x^2] - mean^2 (biased)
        s = jnp.dot(ones_row, pre, preferred_element_type=jnp.float32)         # (1, P)
        ss = jnp.dot(ones_row, pre * pre, preferred_element_type=jnp.float32)  # (1, P)
        mean = s * inv_b
        var = ss * inv_b - mean * mean
        scale = gamma * jax.lax.rsqrt(var + eps)   # fold gamma into the scale
        shift = beta - mean * scale                # fold beta/mean into the shift
        return jnp.maximum(pre * scale + shift, 0.0)  # single FMA + ReLU per element

    x = x_ref[...]

    # input block: Linear(input_dim -> hidden, bias=False) + BN + ReLU (+ Dropout=id)
    h = bn_relu(jnp.dot(x, w_in_ref[...], preferred_element_type=jnp.float32),
                g_in_ref[...], b_in_ref[...])

    # residual hidden blocks (static unroll; hidden_layers is a compile-time const)
    for i in range(w_h_ref.shape[0]):
        pre = jnp.dot(h, w_h_ref[i], preferred_element_type=jnp.float32)
        h = h + bn_relu(pre, g_h_ref[i], b_h_ref[i])

    # code head: Linear(hidden -> code) with bias; lane-dense (B, 128) store
    out_ref[...] = (jnp.dot(h, w_c_ref[...], preferred_element_type=jnp.float32)
                    + b_c_ref[...])


def encoder_forward(x, padded, code_dim):
    batch = x.shape[0]
    n_layers = padded["w_h"].shape[0]
    in_dim = padded["w_in"].shape[0]

    # Advisory cost estimate so XLA can overlap this tiny custom call.
    matmul_flops = 2 * batch * (in_dim * PAD + n_layers * PAD * PAD + PAD * PAD)
    moment_flops = (n_layers + 1) * 2 * (2 * batch * PAD)
    bytes_accessed = 4 * (int(x.size) + sum(int(v.size) for v in padded.values())
                          + batch * PAD)
    cost = pl.CostEstimate(flops=matmul_flops + moment_flops,
                           transcendentals=(n_layers + 1) * PAD,
                           bytes_accessed=bytes_accessed)

    vmem = pl.BlockSpec(memory_space=pltpu.MemorySpace.VMEM)
    out_padded = pl.pallas_call(
        encoder_kernel,
        out_shape=jax.ShapeDtypeStruct((batch, PAD), jnp.float32),
        in_specs=[vmem] * 9,
        out_specs=vmem,
        cost_estimate=cost,
    )(x,
      padded["w_in"], padded["g_in"], padded["b_in"],
      padded["w_h"], padded["g_h"], padded["b_h"],
      padded["w_code"], padded["b_code"])
    # strip the zero padding outside the kernel (padded lanes are exactly 0)
    return out_padded[:, :code_dim]


def xavier_uniform(key, fan_in, fan_out):
    bound = math.sqrt(6.0 / (fan_in + fan_out))
    # stored as [in, out] so the kernel computes h @ W (== torch's x @ W^T)
    return jax.random.uniform(key, (fan_in, fan_out), jnp.float32, -bound, bound)


def make_raw_params(key, input_dim, hidden_dim, code_dim, hidden_layers):
    """Unpadded (torch-equivalent) parameters, weights stored [in, out]."""
    keys = jax.random.split(key, hidden_layers + 3)
    w_in = xavier_uniform(keys[0], input_dim, hidden_dim)
    w_h = jnp.stack([xavier_uniform(keys[1 + i], hidden_dim, hidden_dim)
                     for i in range(hidden_layers)], axis=0)          # [L, H, H]
    w_code = xavier_uniform(keys[-2], hidden_dim, code_dim)            # [H, C]
    # TODO(synk): torch's default nn.Linear bias init uses torch's RNG stream
    # (uniform(-1/sqrt(fan_in), 1/sqrt(fan_in))); same distribution, different values.
    bound = 1.0 / math.sqrt(hidden_dim)
    b_code = jax.random.uniform(keys[-1], (1, code_dim), jnp.float32, -bound, bound)
    return {"w_in": w_in, "w_h": w_h, "w_code": w_code, "b_code": b_code}


def pad_params(raw, hidden_layers):
    """Zero-pad hidden/code feature dims to PAD lanes for the kernel."""
    def pad2(w, rows, cols):
        return jnp.zeros((rows, cols), jnp.float32).at[:w.shape[0], :w.shape[1]].set(w)

    in_dim = raw["w_in"].shape[0]
    w_h = jnp.stack([pad2(raw["w_h"][i], PAD, PAD) for i in range(hidden_layers)])
    return {
        "w_in": pad2(raw["w_in"], in_dim, PAD),
        "g_in": jnp.ones((1, PAD), jnp.float32),            # BN weight = 1
        "b_in": jnp.zeros((1, PAD), jnp.float32),            # BN bias   = 0
        "w_h": w_h,                                          # [L, PAD, PAD]
        "g_h": jnp.ones((hidden_layers, 1, PAD), jnp.float32),
        "b_h": jnp.zeros((hidden_layers, 1, PAD), jnp.float32),
        "w_code": pad2(raw["w_code"], PAD, PAD),
        "b_code": pad2(raw["b_code"], 1, PAD),
    }


def reference_forward(x, raw):
    """Pure-JAX reference (two-pass BN, unpadded weights) for a sanity check."""
    eps = 1e-5

    def bn_relu(pre):
        mean = jnp.mean(pre, axis=0, keepdims=True)
        var = jnp.mean((pre - mean) ** 2, axis=0, keepdims=True)
        return jnp.maximum((pre - mean) / jnp.sqrt(var + eps), 0.0)

    h = bn_relu(x @ raw["w_in"])
    for i in range(raw["w_h"].shape[0]):
        h = h + bn_relu(h @ raw["w_h"][i])
    return h @ raw["w_code"] + raw["b_code"]


if __name__ == "__main__":
    INPUT_DIM = 32
    HIDDEN_DIM = 30
    CODE_DIM = 25
    HIDDEN_LAYERS = 5
    BATCH = 128  # larger batch per call amortizes fixed overhead; BN stats stay exact

    key = jax.random.PRNGKey(0)
    k_x, k_p = jax.random.split(key)
    x = jax.random.normal(k_x, (BATCH, INPUT_DIM), jnp.float32)

    raw = make_raw_params(k_p, INPUT_DIM, HIDDEN_DIM, CODE_DIM, HIDDEN_LAYERS)
    padded = pad_params(raw, HIDDEN_LAYERS)

    out = encoder_forward(x, padded, CODE_DIM)
    out = jax.block_until_ready(out)

    ref = reference_forward(x, raw)
    assert out.shape == (BATCH, CODE_DIM), out.shape
    max_err = float(jnp.max(jnp.abs(out - ref)))
    assert jnp.allclose(out, ref, atol=1e-3, rtol=1e-3), f"mismatch vs reference: {max_err}"

    print("KERNEL_OK")
</pallas_src>

<mosaic_0001>
module attributes {stable_mosaic.version = 11 : i64} {
  func.func @encoder_kernel(%arg0: memref<128x32xf32, #tpu.memory_space<vmem>>, %arg1: memref<32x128xf32, #tpu.memory_space<vmem>>, %arg2: memref<1x128xf32, #tpu.memory_space<vmem>>, %arg3: memref<1x128xf32, #tpu.memory_space<vmem>>, %arg4: memref<5x128x128xf32, #tpu.memory_space<vmem>>, %arg5: memref<5x1x128xf32, #tpu.memory_space<vmem>>, %arg6: memref<5x1x128xf32, #tpu.memory_space<vmem>>, %arg7: memref<128x128xf32, #tpu.memory_space<vmem>>, %arg8: memref<1x128xf32, #tpu.memory_space<vmem>>, %arg9: memref<128x128xf32, #tpu.memory_space<vmem>>) attributes {dimension_semantics = [], scalar_prefetch = 0 : i64, scratch_operands = 0 : i64, tpu.core_type = #tpu.core_type<tc>} {
    %cst = arith.constant 1.000000e+00 : f32
    %0 = vector.broadcast %cst : f32 to vector<1x128xf32>
    %c0 = arith.constant 0 : index
    %c0_0 = arith.constant 0 : index
    %1 = vector.load %arg0[%c0, %c0_0] : memref<128x32xf32, #tpu.memory_space<vmem>>, vector<128x32xf32>
    %c0_1 = arith.constant 0 : index
    %c0_2 = arith.constant 0 : index
    %2 = vector.load %arg1[%c0_1, %c0_2] : memref<32x128xf32, #tpu.memory_space<vmem>>, vector<32x128xf32>
    %cst_3 = arith.constant dense<0.000000e+00> : vector<128x128xf32>
    %3 = tpu.matmul %1, %2, %cst_3 {dimension_numbers = #tpu.dot_dimension_numbers<[1], [0], [0], [1], [0, 0, 1, 1], [], []>} : vector<128x32xf32>, vector<32x128xf32>, vector<128x128xf32> -> vector<128x128xf32>
    %c0_4 = arith.constant 0 : index
    %c0_5 = arith.constant 0 : index
    %4 = vector.load %arg2[%c0_4, %c0_5] : memref<1x128xf32, #tpu.memory_space<vmem>>, vector<1x128xf32>
    %c0_6 = arith.constant 0 : index
    %c0_7 = arith.constant 0 : index
    %5 = vector.load %arg3[%c0_6, %c0_7] : memref<1x128xf32, #tpu.memory_space<vmem>>, vector<1x128xf32>
    %cst_8 = arith.constant dense<0.000000e+00> : vector<1x128xf32>
    %6 = tpu.matmul %0, %3, %cst_8 {dimension_numbers = #tpu.dot_dimension_numbers<[1], [0], [0], [1], [0, 0, 1, 1], [], []>} : vector<1x128xf32>, vector<128x128xf32>, vector<1x128xf32> -> vector<1x128xf32>
    %7 = arith.mulf %3, %3 : vector<128x128xf32>
    %cst_9 = arith.constant dense<0.000000e+00> : vector<1x128xf32>
    %8 = tpu.matmul %0, %7, %cst_9 {dimension_numbers = #tpu.dot_dimension_numbers<[1], [0], [0], [1], [0, 0, 1, 1], [], []>} : vector<1x128xf32>, vector<128x128xf32>, vector<1x128xf32> -> vector<1x128xf32>
    %cst_10 = arith.constant 7.812500e-03 : f32
    %9 = vector.broadcast %cst_10 : f32 to vector<1x128xf32>
    %10 = arith.mulf %6, %9 : vector<1x128xf32>
    %cst_11 = arith.constant 7.812500e-03 : f32
    %11 = vector.broadcast %cst_11 : f32 to vector<1x128xf32>
    %12 = arith.mulf %8, %11 : vector<1x128xf32>
    %13 = arith.mulf %10, %10 : vector<1x128xf32>
    %14 = arith.subf %12, %13 : vector<1x128xf32>
    %cst_12 = arith.constant 9.99999974E-6 : f32
    %15 = vector.broadcast %cst_12 : f32 to vector<1x128xf32>
    %16 = arith.addf %14, %15 : vector<1x128xf32>
    %17 = math.rsqrt %16 : vector<1x128xf32>
    %18 = arith.mulf %4, %17 : vector<1x128xf32>
    %19 = arith.mulf %10, %18 : vector<1x128xf32>
    %20 = arith.subf %5, %19 : vector<1x128xf32>
    %21 = vector.broadcast %18 : vector<1x128xf32> to vector<128x128xf32>
    %22 = arith.mulf %3, %21 : vector<128x128xf32>
    %23 = vector.broadcast %20 : vector<1x128xf32> to vector<128x128xf32>
    %24 = arith.addf %22, %23 : vector<128x128xf32>
    %cst_13 = arith.constant 0.000000e+00 : f32
    %25 = vector.broadcast %cst_13 : f32 to vector<128x128xf32>
    %26 = arith.maximumf %24, %25 : vector<128x128xf32>
    %c0_14 = arith.constant 0 : index
    %c0_15 = arith.constant 0 : index
    %c0_16 = arith.constant 0 : index
    %27 = vector.load %arg4[%c0_14, %c0_15, %c0_16] : memref<5x128x128xf32, #tpu.memory_space<vmem>>, vector<1x128x128xf32>
    %28 = vector.shape_cast %27 : vector<1x128x128xf32> to vector<128x128xf32>
    %cst_17 = arith.constant dense<0.000000e+00> : vector<128x128xf32>
    %29 = tpu.matmul %26, %28, %cst_17 {dimension_numbers = #tpu.dot_dimension_numbers<[1], [0], [0], [1], [0, 0, 1, 1], [], []>} : vector<128x128xf32>, vector<128x128xf32>, vector<128x128xf32> -> vector<128x128xf32>
    %c0_18 = arith.constant 0 : index
    %c0_19 = arith.constant 0 : index
    %c0_20 = arith.constant 0 : index
    %30 = vector.load %arg5[%c0_18, %c0_19, %c0_20] : memref<5x1x128xf32, #tpu.memory_space<vmem>>, vector<1x1x128xf32>
    %31 = vector.shape_cast %30 : vector<1x1x128xf32> to vector<1x128xf32>
    %c0_21 = arith.constant 0 : index
    %c0_22 = arith.constant 0 : index
    %c0_23 = arith.constant 0 : index
    %32 = vector.load %arg6[%c0_21, %c0_22, %c0_23] : memref<5x1x128xf32, #tpu.memory_space<vmem>>, vector<1x1x128xf32>
    %33 = vector.shape_cast %32 : vector<1x1x128xf32> to vector<1x128xf32>
    %cst_24 = arith.constant dense<0.000000e+00> : vector<1x128xf32>
    %34 = tpu.matmul %0, %29, %cst_24 {dimension_numbers = #tpu.dot_dimension_numbers<[1], [0], [0], [1], [0, 0, 1, 1], [], []>} : vector<1x128xf32>, vector<128x128xf32>, vector<1x128xf32> -> vector<1x128xf32>
    %35 = arith.mulf %29, %29 : vector<128x128xf32>
    %cst_25 = arith.constant dense<0.000000e+00> : vector<1x128xf32>
    %36 = tpu.matmul %0, %35, %cst_25 {dimension_numbers = #tpu.dot_dimension_numbers<[1], [0], [0], [1], [0, 0, 1, 1], [], []>} : vector<1x128xf32>, vector<128x128xf32>, vector<1x128xf32> -> vector<1x128xf32>
    %cst_26 = arith.constant 7.812500e-03 : f32
    %37 = vector.broadcast %cst_26 : f32 to vector<1x128xf32>
    %38 = arith.mulf %34, %37 : vector<1x128xf32>
    %cst_27 = arith.constant 7.812500e-03 : f32
    %39 = vector.broadcast %cst_27 : f32 to vector<1x128xf32>
    %40 = arith.mulf %36, %39 : vector<1x128xf32>
    %41 = arith.mulf %38, %38 : vector<1x128xf32>
    %42 = arith.subf %40, %41 : vector<1x128xf32>
    %cst_28 = arith.constant 9.99999974E-6 : f32
    %43 = vector.broadcast %cst_28 : f32 to vector<1x128xf32>
    %44 = arith.addf %42, %43 : vector<1x128xf32>
    %45 = math.rsqrt %44 : vector<1x128xf32>
    %46 = arith.mulf %31, %45 : vector<1x128xf32>
    %47 = arith.mulf %38, %46 : vector<1x128xf32>
    %48 = arith.subf %33, %47 : vector<1x128xf32>
    %49 = vector.broadcast %46 : vector<1x128xf32> to vector<128x128xf32>
    %50 = arith.mulf %29, %49 : vector<128x128xf32>
    %51 = vector.broadcast %48 : vector<1x128xf32> to vector<128x128xf32>
    %52 = arith.addf %50, %51 : vector<128x128xf32>
    %cst_29 = arith.constant 0.000000e+00 : f32
    %53 = vector.broadcast %cst_29 : f32 to vector<128x128xf32>
    %54 = arith.maximumf %52, %53 : vector<128x128xf32>
    %55 = arith.addf %26, %54 : vector<128x128xf32>
    %c1 = arith.constant 1 : index
    %c0_30 = arith.constant 0 : index
    %c0_31 = arith.constant 0 : index
    %56 = vector.load %arg4[%c1, %c0_30, %c0_31] : memref<5x128x128xf32, #tpu.memory_space<vmem>>, vector<1x128x128xf32>
    %57 = vector.shape_cast %56 : vector<1x128x128xf32> to vector<128x128xf32>
    %cst_32 = arith.constant dense<0.000000e+00> : vector<128x128xf32>
    %58 = tpu.matmul %55, %57, %cst_32 {dimension_numbers = #tpu.dot_dimension_numbers<[1], [0], [0], [1], [0, 0, 1, 1], [], []>} : vector<128x128xf32>, vector<128x128xf32>, vector<128x128xf32> -> vector<128x128xf32>
    %c1_33 = arith.constant 1 : index
    %c0_34 = arith.constant 0 : index
    %c0_35 = arith.constant 0 : index
    %59 = vector.load %arg5[%c1_33, %c0_34, %c0_35] : memref<5x1x128xf32, #tpu.memory_space<vmem>>, vector<1x1x128xf32>
    %60 = vector.shape_cast %59 : vector<1x1x128xf32> to vector<1x128xf32>
    %c1_36 = arith.constant 1 : index
    %c0_37 = arith.constant 0 : index
    %c0_38 = arith.constant 0 : index
    %61 = vector.load %arg6[%c1_36, %c0_37, %c0_38] : memref<5x1x128xf32, #tpu.memory_space<vmem>>, vector<1x1x128xf32>
    %62 = vector.shape_cast %61 : vector<1x1x128xf32> to vector<1x128xf32>
    %cst_39 = arith.constant dense<0.000000e+00> : vector<1x128xf32>
    %63 = tpu.matmul %0, %58, %cst_39 {dimension_numbers = #tpu.dot_dimension_numbers<[1], [0], [0], [1], [0, 0, 1, 1], [], []>} : vector<1x128xf32>, vector<128x128xf32>, vector<1x128xf32> -> vector<1x128xf32>
    %64 = arith.mulf %58, %58 : vector<128x128xf32>
    %cst_40 = arith.constant dense<0.000000e+00> : vector<1x128xf32>
    %65 = tpu.matmul %0, %64, %cst_40 {dimension_numbers = #tpu.dot_dimension_numbers<[1], [0], [0], [1], [0, 0, 1, 1], [], []>} : vector<1x128xf32>, vector<128x128xf32>, vector<1x128xf32> -> vector<1x128xf32>
    %cst_41 = arith.constant 7.812500e-03 : f32
    %66 = vector.broadcast %cst_41 : f32 to vector<1x128xf32>
    %67 = arith.mulf %63, %66 : vector<1x128xf32>
    %cst_42 = arith.constant 7.812500e-03 : f32
    %68 = vector.broadcast %cst_42 : f32 to vector<1x128xf32>
    %69 = arith.mulf %65, %68 : vector<1x128xf32>
    %70 = arith.mulf %67, %67 : vector<1x128xf32>
    %71 = arith.subf %69, %70 : vector<1x128xf32>
    %cst_43 = arith.constant 9.99999974E-6 : f32
    %72 = vector.broadcast %cst_43 : f32 to vector<1x128xf32>
    %73 = arith.addf %71, %72 : vector<1x128xf32>
    %74 = math.rsqrt %73 : vector<1x128xf32>
    %75 = arith.mulf %60, %74 : vector<1x128xf32>
    %76 = arith.mulf %67, %75 : vector<1x128xf32>
    %77 = arith.subf %62, %76 : vector<1x128xf32>
    %78 = vector.broadcast %75 : vector<1x128xf32> to vector<128x128xf32>
    %79 = arith.mulf %58, %78 : vector<128x128xf32>
    %80 = vector.broadcast %77 : vector<1x128xf32> to vector<128x128xf32>
    %81 = arith.addf %79, %80 : vector<128x128xf32>
    %cst_44 = arith.constant 0.000000e+00 : f32
    %82 = vector.broadcast %cst_44 : f32 to vector<128x128xf32>
    %83 = arith.maximumf %81, %82 : vector<128x128xf32>
    %84 = arith.addf %55, %83 : vector<128x128xf32>
    %c2 = arith.constant 2 : index
    %c0_45 = arith.constant 0 : index
    %c0_46 = arith.constant 0 : index
    %85 = vector.load %arg4[%c2, %c0_45, %c0_46] : memref<5x128x128xf32, #tpu.memory_space<vmem>>, vector<1x128x128xf32>
    %86 = vector.shape_cast %85 : vector<1x128x128xf32> to vector<128x128xf32>
    %cst_47 = arith.constant dense<0.000000e+00> : vector<128x128xf32>
    %87 = tpu.matmul %84, %86, %cst_47 {dimension_numbers = #tpu.dot_dimension_numbers<[1], [0], [0], [1], [0, 0, 1, 1], [], []>} : vector<128x128xf32>, vector<128x128xf32>, vector<128x128xf32> -> vector<128x128xf32>
    %c2_48 = arith.constant 2 : index
    %c0_49 = arith.constant 0 : index
    %c0_50 = arith.constant 0 : index
    %88 = vector.load %arg5[%c2_48, %c0_49, %c0_50] : memref<5x1x128xf32, #tpu.memory_space<vmem>>, vector<1x1x128xf32>
    %89 = vector.shape_cast %88 : vector<1x1x128xf32> to vector<1x128xf32>
    %c2_51 = arith.constant 2 : index
    %c0_52 = arith.constant 0 : index
    %c0_53 = arith.constant 0 : index
    %90 = vector.load %arg6[%c2_51, %c0_52, %c0_53] : memref<5x1x128xf32, #tpu.memory_space<vmem>>, vector<1x1x128xf32>
    %91 = vector.shape_cast %90 : vector<1x1x128xf32> to vector<1x128xf32>
    %cst_54 = arith.constant dense<0.000000e+00> : vector<1x128xf32>
    %92 = tpu.matmul %0, %87, %cst_54 {dimension_numbers = #tpu.dot_dimension_numbers<[1], [0], [0], [1], [0, 0, 1, 1], [], []>} : vector<1x128xf32>, vector<128x128xf32>, vector<1x128xf32> -> vector<1x128xf32>
    %93 = arith.mulf %87, %87 : vector<128x128xf32>
    %cst_55 = arith.constant dense<0.000000e+00> : vector<1x128xf32>
    %94 = tpu.matmul %0, %93, %cst_55 {dimension_numbers = #tpu.dot_dimension_numbers<[1], [0], [0], [1], [0, 0, 1, 1], [], []>} : vector<1x128xf32>, vector<128x128xf32>, vector<1x128xf32> -> vector<1x128xf32>
    %cst_56 = arith.constant 7.812500e-03 : f32
    %95 = vector.broadcast %cst_56 : f32 to vector<1x128xf32>
    %96 = arith.mulf %92, %95 : vector<1x128xf32>
    %cst_57 = arith.constant 7.812500e-03 : f32
    %97 = vector.broadcast %cst_57 : f32 to vector<1x128xf32>
    %98 = arith.mulf %94, %97 : vector<1x128xf32>
    %99 = arith.mulf %96, %96 : vector<1x128xf32>
    %100 = arith.subf %98, %99 : vector<1x128xf32>
    %cst_58 = arith.constant 9.99999974E-6 : f32
    %101 = vector.broadcast %cst_58 : f32 to vector<1x128xf32>
    %102 = arith.addf %100, %101 : vector<1x128xf32>
    %103 = math.rsqrt %102 : vector<1x128xf32>
    %104 = arith.mulf %89, %103 : vector<1x128xf32>
    %105 = arith.mulf %96, %104 : vector<1x128xf32>
    %106 = arith.subf %91, %105 : vector<1x128xf32>
    %107 = vector.broadcast %104 : vector<1x128xf32> to vector<128x128xf32>
    %108 = arith.mulf %87, %107 : vector<128x128xf32>
    %109 = vector.broadcast %106 : vector<1x128xf32> to vector<128x128xf32>
    %110 = arith.addf %108, %109 : vector<128x128xf32>
    %cst_59 = arith.constant 0.000000e+00 : f32
    %111 = vector.broadcast %cst_59 : f32 to vector<128x128xf32>
    %112 = arith.maximumf %110, %111 : vector<128x128xf32>
    %113 = arith.addf %84, %112 : vector<128x128xf32>
    %c3 = arith.constant 3 : index
    %c0_60 = arith.constant 0 : index
    %c0_61 = arith.constant 0 : index
    %114 = vector.load %arg4[%c3, %c0_60, %c0_61] : memref<5x128x128xf32, #tpu.memory_space<vmem>>, vector<1x128x128xf32>
    %115 = vector.shape_cast %114 : vector<1x128x128xf32> to vector<128x128xf32>
    %cst_62 = arith.constant dense<0.000000e+00> : vector<128x128xf32>
    %116 = tpu.matmul %113, %115, %cst_62 {dimension_numbers = #tpu.dot_dimension_numbers<[1], [0], [0], [1], [0, 0, 1, 1], [], []>} : vector<128x128xf32>, vector<128x128xf32>, vector<128x128xf32> -> vector<128x128xf32>
    %c3_63 = arith.constant 3 : index
    %c0_64 = arith.constant 0 : index
    %c0_65 = arith.constant 0 : index
    %117 = vector.load %arg5[%c3_63, %c0_64, %c0_65] : memref<5x1x128xf32, #tpu.memory_space<vmem>>, vector<1x1x128xf32>
    %118 = vector.shape_cast %117 : vector<1x1x128xf32> to vector<1x128xf32>
    %c3_66 = arith.constant 3 : index
    %c0_67 = arith.constant 0 : index
    %c0_68 = arith.constant 0 : index
    %119 = vector.load %arg6[%c3_66, %c0_67, %c0_68] : memref<5x1x128xf32, #tpu.memory_space<vmem>>, vector<1x1x128xf32>
    %120 = vector.shape_cast %119 : vector<1x1x128xf32> to vector<1x128xf32>
    %cst_69 = arith.constant dense<0.000000e+00> : vector<1x128xf32>
    %121 = tpu.matmul %0, %116, %cst_69 {dimension_numbers = #tpu.dot_dimension_numbers<[1], [0], [0], [1], [0, 0, 1, 1], [], []>} : vector<1x128xf32>, vector<128x128xf32>, vector<1x128xf32> -> vector<1x128xf32>
    %122 = arith.mulf %116, %116 : vector<128x128xf32>
    %cst_70 = arith.constant dense<0.000000e+00> : vector<1x128xf32>
    %123 = tpu.matmul %0, %122, %cst_70 {dimension_numbers = #tpu.dot_dimension_numbers<[1], [0], [0], [1], [0, 0, 1, 1], [], []>} : vector<1x128xf32>, vector<128x128xf32>, vector<1x128xf32> -> vector<1x128xf32>
    %cst_71 = arith.constant 7.812500e-03 : f32
    %124 = vector.broadcast %cst_71 : f32 to vector<1x128xf32>
    %125 = arith.mulf %121, %124 : vector<1x128xf32>
    %cst_72 = arith.constant 7.812500e-03 : f32
    %126 = vector.broadcast %cst_72 : f32 to vector<1x128xf32>
    %127 = arith.mulf %123, %126 : vector<1x128xf32>
    %128 = arith.mulf %125, %125 : vector<1x128xf32>
    %129 = arith.subf %127, %128 : vector<1x128xf32>
    %cst_73 = arith.constant 9.99999974E-6 : f32
    %130 = vector.broadcast %cst_73 : f32 to vector<1x128xf32>
    %131 = arith.addf %129, %130 : vector<1x128xf32>
    %132 = math.rsqrt %131 : vector<1x128xf32>
    %133 = arith.mulf %118, %132 : vector<1x128xf32>
    %134 = arith.mulf %125, %133 : vector<1x128xf32>
    %135 = arith.subf %120, %134 : vector<1x128xf32>
    %136 = vector.broadcast %133 : vector<1x128xf32> to vector<128x128xf32>
    %137 = arith.mulf %116, %136 : vector<128x128xf32>
    %138 = vector.broadcast %135 : vector<1x128xf32> to vector<128x128xf32>
    %139 = arith.addf %137, %138 : vector<128x128xf32>
    %cst_74 = arith.constant 0.000000e+00 : f32
    %140 = vector.broadcast %cst_74 : f32 to vector<128x128xf32>
    %141 = arith.maximumf %139, %140 : vector<128x128xf32>
    %142 = arith.addf %113, %141 : vector<128x128xf32>
    %c4 = arith.constant 4 : index
    %c0_75 = arith.constant 0 : index
    %c0_76 = arith.constant 0 : index
    %143 = vector.load %arg4[%c4, %c0_75, %c0_76] : memref<5x128x128xf32, #tpu.memory_space<vmem>>, vector<1x128x128xf32>
    %144 = vector.shape_cast %143 : vector<1x128x128xf32> to vector<128x128xf32>
    %cst_77 = arith.constant dense<0.000000e+00> : vector<128x128xf32>
    %145 = tpu.matmul %142, %144, %cst_77 {dimension_numbers = #tpu.dot_dimension_numbers<[1], [0], [0], [1], [0, 0, 1, 1], [], []>} : vector<128x128xf32>, vector<128x128xf32>, vector<128x128xf32> -> vector<128x128xf32>
    %c4_78 = arith.constant 4 : index
    %c0_79 = arith.constant 0 : index
    %c0_80 = arith.constant 0 : index
    %146 = vector.load %arg5[%c4_78, %c0_79, %c0_80] : memref<5x1x128xf32, #tpu.memory_space<vmem>>, vector<1x1x128xf32>
    %147 = vector.shape_cast %146 : vector<1x1x128xf32> to vector<1x128xf32>
    %c4_81 = arith.constant 4 : index
    %c0_82 = arith.constant 0 : index
    %c0_83 = arith.constant 0 : index
    %148 = vector.load %arg6[%c4_81, %c0_82, %c0_83] : memref<5x1x128xf32, #tpu.memory_space<vmem>>, vector<1x1x128xf32>
    %149 = vector.shape_cast %148 : vector<1x1x128xf32> to vector<1x128xf32>
    %cst_84 = arith.constant dense<0.000000e+00> : vector<1x128xf32>
    %150 = tpu.matmul %0, %145, %cst_84 {dimension_numbers = #tpu.dot_dimension_numbers<[1], [0], [0], [1], [0, 0, 1, 1], [], []>} : vector<1x128xf32>, vector<128x128xf32>, vector<1x128xf32> -> vector<1x128xf32>
    %151 = arith.mulf %145, %145 : vector<128x128xf32>
    %cst_85 = arith.constant dense<0.000000e+00> : vector<1x128xf32>
    %152 = tpu.matmul %0, %151, %cst_85 {dimension_numbers = #tpu.dot_dimension_numbers<[1], [0], [0], [1], [0, 0, 1, 1], [], []>} : vector<1x128xf32>, vector<128x128xf32>, vector<1x128xf32> -> vector<1x128xf32>
    %cst_86 = arith.constant 7.812500e-03 : f32
    %153 = vector.broadcast %cst_86 : f32 to vector<1x128xf32>
    %154 = arith.mulf %150, %153 : vector<1x128xf32>
    %cst_87 = arith.constant 7.812500e-03 : f32
    %155 = vector.broadcast %cst_87 : f32 to vector<1x128xf32>
    %156 = arith.mulf %152, %155 : vector<1x128xf32>
    %157 = arith.mulf %154, %154 : vector<1x128xf32>
    %158 = arith.subf %156, %157 : vector<1x128xf32>
    %cst_88 = arith.constant 9.99999974E-6 : f32
    %159 = vector.broadcast %cst_88 : f32 to vector<1x128xf32>
    %160 = arith.addf %158, %159 : vector<1x128xf32>
    %161 = math.rsqrt %160 : vector<1x128xf32>
    %162 = arith.mulf %147, %161 : vector<1x128xf32>
    %163 = arith.mulf %154, %162 : vector<1x128xf32>
    %164 = arith.subf %149, %163 : vector<1x128xf32>
    %165 = vector.broadcast %162 : vector<1x128xf32> to vector<128x128xf32>
    %166 = arith.mulf %145, %165 : vector<128x128xf32>
    %167 = vector.broadcast %164 : vector<1x128xf32> to vector<128x128xf32>
    %168 = arith.addf %166, %167 : vector<128x128xf32>
    %cst_89 = arith.constant 0.000000e+00 : f32
    %169 = vector.broadcast %cst_89 : f32 to vector<128x128xf32>
    %170 = arith.maximumf %168, %169 : vector<128x128xf32>
    %171 = arith.addf %142, %170 : vector<128x128xf32>
    %c0_90 = arith.constant 0 : index
    %c0_91 = arith.constant 0 : index
    %172 = vector.load %arg7[%c0_90, %c0_91] : memref<128x128xf32, #tpu.memory_space<vmem>>, vector<128x128xf32>
    %cst_92 = arith.constant dense<0.000000e+00> : vector<128x128xf32>
    %173 = tpu.matmul %171, %172, %cst_92 {dimension_numbers = #tpu.dot_dimension_numbers<[1], [0], [0], [1], [0, 0, 1, 1], [], []>} : vector<128x128xf32>, vector<128x128xf32>, vector<128x128xf32> -> vector<128x128xf32>
    %c0_93 = arith.constant 0 : index
    %c0_94 = arith.constant 0 : index
    %174 = vector.load %arg8[%c0_93, %c0_94] : memref<1x128xf32, #tpu.memory_space<vmem>>, vector<1x128xf32>
    %175 = vector.broadcast %174 : vector<1x128xf32> to vector<128x128xf32>
    %176 = arith.addf %173, %175 : vector<128x128xf32>
    %c0_95 = arith.constant 0 : index
    %c0_96 = arith.constant 0 : index
    %177 = vector.load %arg9[%c0_95, %c0_96] : memref<128x128xf32, #tpu.memory_space<vmem>>, vector<128x128xf32>
    tpu.vector_store %arg9[%c0_95, %c0_96], %176 {strides = array<i32>} : memref<128x128xf32, #tpu.memory_space<vmem>>, vector<128x128xf32>,
    return
  }
}

</mosaic_0001>

<llo_original>
// kernel: tpu_custom_call.1
$region0: #{tpu_custom_call.1}
  #allocation0 [shape = 'u32[]', space=smem, size = 0x4, offset = 0x4, fixed_abs, tag = 'smem constant byte address 0x4 - core index']
  #allocation1 [shape = 'u32[144,128]{1,0:T(1,128)}', space=vmem, size = 0x12000, scoped, tag = 'internal scratch']
  %s0 = inlined_call_operand.vmem [shape: f32[128,32], index: 0, kind: input, shape index: {}]
  %s1 = inlined_call_operand.vmem [shape: f32[32,128], index: 1, kind: input, shape index: {}]
  %s2 = inlined_call_operand.vmem [shape: f32[1,128], index: 2, kind: input, shape index: {}]
  %s3 = inlined_call_operand.vmem [shape: f32[1,128], index: 3, kind: input, shape index: {}]
  %s4 = inlined_call_operand.hbm [shape: f32[5,128,128], index: 4, kind: input, shape index: {}]
  %s5 = inlined_call_operand.vmem [shape: f32[5,1,128], index: 5, kind: input, shape index: {}]
  %s6 = inlined_call_operand.vmem [shape: f32[5,1,128], index: 6, kind: input, shape index: {}]
  %s7 = inlined_call_operand.vmem [shape: f32[128,128], index: 7, kind: input, shape index: {}]
  %s8 = inlined_call_operand.vmem [shape: f32[1,128], index: 8, kind: input, shape index: {}]
  %s9 = inlined_call_operand.hbm [shape: f32[128,128], index: 9, kind: output, shape index: {}]
  %s10 = sld [smem:[#allocation0]]
  $region50: #{tpu_custom_call.1} parent=0
    _
  %s12 = ssub.s32 1, %s10
  %s13 = scalar_select 0, %s12, %s10
  $region1: #{tpu_custom_call.1} parent=0
    #allocation2 [shape = 'u8[327680]{0}', space=vmem, size = 0x50000, scoped, tag = 'input window, operand 4, single buffered']
    #allocation3 [shape = 's32[1]{0}', space=sflag, size = 0x4, scoped, tag = 'scoped memory for tpu_custom_call.1']
    #allocation4 [shape = 's32[1]{0}', space=sflag, size = 0x4, scoped, tag = 'scoped memory for tpu_custom_call.1']
    #allocation5 [shape = 'u8[65536]{0}', space=vmem, size = 0x10000, scoped, tag = 'output window, operand 0, single buffered']
    %14 = vsyncpa [#allocation3], 0
    %15 = vsyncpa [#allocation4], 0
    // Predicated region
    $region2: #{tpu_custom_call.1} parent=1 // pred_check
      _
    $region3: #{tpu_custom_call.1} parent=1 // pred_check_branch
      %17 = sbr.rel (0) target = $region5
    $region4: #{tpu_custom_call.1} parent=1 // pred_region
      _
    $region5: #{tpu_custom_call.1} parent=1 // pred_fallthru
      _
    // Predicated region
    $region6: #{tpu_custom_call.1} parent=1 // pred_check
      _
    $region7: #{tpu_custom_call.1} parent=1 // pred_check_branch
      %19 = sbr.rel (0) target = $region9
    $region8: #{tpu_custom_call.1} parent=1 // pred_region
      _
    $region9: #{tpu_custom_call.1} parent=1 // pred_fallthru
      _
    // Predicated region
    $region10: #{tpu_custom_call.1} parent=1 // pred_check
      _
    $region11: #{tpu_custom_call.1} parent=1 // pred_check_branch
      %21 = sbr.rel (0) target = $region13
    $region12: #{tpu_custom_call.1} parent=1 // pred_region
      _
    $region13: #{tpu_custom_call.1} parent=1 // pred_fallthru
      _
    // Predicated region
    $region14: #{tpu_custom_call.1} parent=1 // pred_check
      _
    $region15: #{tpu_custom_call.1} parent=1 // pred_check_branch
      %23 = sbr.rel (0) target = $region17
    $region16: #{tpu_custom_call.1} parent=1 // pred_region
      _
    $region17: #{tpu_custom_call.1} parent=1 // pred_fallthru
      _
    // Predicated region
    $region18: #{tpu_custom_call.1} parent=1 // pred_check
      _
    $region19: #{tpu_custom_call.1} parent=1 // pred_check_branch
      %25 = sbr.rel (0) target = $region21
    $region20: #{tpu_custom_call.1} parent=1 // pred_region
      %s27 = ssub.s32 10240, 10240
      %28 = vsyncadd [#allocation3], %s27
      %s29 = sshll.u32 [#allocation2], 4
      %s30 = int_to_ptr.vmem [resolvable:$true] %s29
      %35 = dma.hbm_to_vmem [thread:$0]  %s4, 10240, %s30, [#allocation3], 128, 128, 8
    $region21: #{tpu_custom_call.1} parent=1 // pred_fallthru
      _
    // Predicated region
    $region22: #{tpu_custom_call.1} parent=1 // pred_check
      _
    $region23: #{tpu_custom_call.1} parent=1 // pred_check_branch
      %37 = sbr.rel (0) target = $region25
    $region24: #{tpu_custom_call.1} parent=1 // pred_region
      _
    $region25: #{tpu_custom_call.1} parent=1 // pred_fallthru
      _
    // Predicated region
    $region26: #{tpu_custom_call.1} parent=1 // pred_check
      _
    $region27: #{tpu_custom_call.1} parent=1 // pred_check_branch
      %39 = sbr.rel (0) target = $region29
    $region28: #{tpu_custom_call.1} parent=1 // pred_region
      _
    $region29: #{tpu_custom_call.1} parent=1 // pred_fallthru
      _
    // Predicated region
    $region30: #{tpu_custom_call.1} parent=1 // pred_check
      _
    $region31: #{tpu_custom_call.1} parent=1 // pred_check_branch
      %41 = sbr.rel (0) target = $region33
    $region32: #{tpu_custom_call.1} parent=1 // pred_region
      _
    $region33: #{tpu_custom_call.1} parent=1 // pred_fallthru
      _
    // Predicated region
    $region34: #{tpu_custom_call.1} parent=1 // pred_check
      _
    $region35: #{tpu_custom_call.1} parent=1 // pred_check_branch
      %43 = sbr.rel (0) target = $region37
    $region36: #{tpu_custom_call.1} parent=1 // pred_region
      _
    $region37: #{tpu_custom_call.1} parent=1 // pred_fallthru
      _
    // Predicated region
    $region38: #{tpu_custom_call.1} parent=1 // pred_check
      _
    $region39: #{tpu_custom_call.1} parent=1 // pred_check_branch
      %45 = sbr.rel (0) target = $region41
    $region40: #{tpu_custom_call.1} parent=1 // pred_region
      %46 = dma.done [#allocation3], 10240
    $region41: #{tpu_custom_call.1} parent=1 // pred_fallthru
      _
    %v47 = vld [vmem:[%s0] sm:$0xff]
    %v48 = vld [vmem:[%s0 + $0x8] sm:$0xff]
    %v49 = vld [vmem:[%s0 + $0x10] sm:$0xff]
    %v50 = vld [vmem:[%s0 + $0x18] sm:$0xff]
    %v51 = vld [vmem:[%s0 + $0x20] sm:$0xff]
    %v52 = vld [vmem:[%s0 + $0x28] sm:$0xff]
    %v53 = vld [vmem:[%s0 + $0x30] sm:$0xff]
    %v54 = vld [vmem:[%s0 + $0x38] sm:$0xff]
    %v55 = vld [vmem:[%s0 + $0x40] sm:$0xff]
    %v56 = vld [vmem:[%s0 + $0x48] sm:$0xff]
    %v57 = vld [vmem:[%s0 + $0x50] sm:$0xff]
    %v58 = vld [vmem:[%s0 + $0x58] sm:$0xff]
    %v59 = vld [vmem:[%s0 + $0x60] sm:$0xff]
    %v60 = vld [vmem:[%s0 + $0x68] sm:$0xff]
    %v61 = vld [vmem:[%s0 + $0x70] sm:$0xff]
    %v62 = vld [vmem:[%s0 + $0x78] sm:$0xff]
    %v63 = vld [vmem:[%s1] sm:$0xff]
    %v64 = vld [vmem:[%s1 + $0x8] sm:$0xff]
    %v65 = vld [vmem:[%s1 + $0x10] sm:$0xff]
    %v66 = vld [vmem:[%s1 + $0x18] sm:$0xff]
    %vm67 = vcmask 261120
    %v69 = vsel %vm67, %v47, 0
    %v72 = vsel %vm67, %v48, 0
    %v75 = vsel %vm67, %v49, 0
    %v78 = vsel %vm67, %v50, 0
    %v81 = vsel %vm67, %v51, 0
    %v84 = vsel %vm67, %v52, 0
    %v87 = vsel %vm67, %v53, 0
    %v90 = vsel %vm67, %v54, 0
    %v93 = vsel %vm67, %v55, 0
    %v96 = vsel %vm67, %v56, 0
    %v99 = vsel %vm67, %v57, 0
    %v102 = vsel %vm67, %v58, 0
    %v105 = vsel %vm67, %v59, 0
    %v108 = vsel %vm67, %v60, 0
    %v111 = vsel %vm67, %v61, 0
    %v114 = vsel %vm67, %v62, 0
    %116 = vmatprep.subr.mxu0 0.0
    %117 = vmatpush1.msra.mxu0 0.0
    %118 = vmatprep.subr.mxu0 0.0
    %119 = vmatpush1.msra.mxu0 0.0
    %120 = vmatprep.subr.mxu0 0.0
    %121 = vmatpush1.msra.mxu0 0.0
    %122 = vmatprep.subr.mxu0 0.0
    %123 = vmatpush1.msra.mxu0 0.0
    %124 = vmatprep.subr.mxu0 0.0
    %125 = vmatpush1.msra.mxu0 0.0
    %126 = vmatprep.subr.mxu0 0.0
    %127 = vmatpush1.msra.mxu0 0.0
    %128 = vmatprep.subr.mxu0 0.0
    %129 = vmatpush1.msra.mxu0 0.0
    %130 = vmatprep.subr.mxu0 0.0
    %131 = vmatpush1.msra.mxu0 0.0
    %132 = vmatprep.subr.mxu0 0.0
    %133 = vmatpush1.msra.mxu0 0.0
    %134 = vmatprep.subr.mxu0 0.0
    %135 = vmatpush1.msra.mxu0 0.0
    %136 = vmatprep.subr.mxu0 0.0
    %137 = vmatpush1.msra.mxu0 0.0
    %138 = vmatprep.subr.mxu0 0.0
    %139 = vmatpush1.msra.mxu0 0.0
    %140 = vmatprep.subr.mxu0 0.0
    %141 = vmatpush1.msra.mxu0 %v66
    %142 = vmatprep.subr.mxu0 0.0
    %143 = vmatpush1.msra.mxu0 %v65
    %144 = vmatprep.subr.mxu0 0.0
    %145 = vmatpush1.msra.mxu0 %v64
    %146 = vmatprep.subr.mxu0 0.0
    %147 = vmatpush1.msra.mxu0 %v63
    %148 = vmatprep.subr.mxu0 0.0
    %149 = vmatpush2.msra.mxu0 0.0
    %150 = vmatprep.subr.mxu0 0.0
    %151 = vmatpush2.msra.mxu0 0.0
    %152 = vmatprep.subr.mxu0 0.0
    %153 = vmatpush2.msra.mxu0 0.0
    %154 = vmatprep.subr.mxu0 0.0
    %155 = vmatpush2.msra.mxu0 0.0
    %156 = vmatprep.subr.mxu0 0.0
    %157 = vmatpush2.msra.mxu0 0.0
    %158 = vmatprep.subr.mxu0 0.0
    %159 = vmatpush2.msra.mxu0 0.0
    %160 = vmatprep.subr.mxu0 0.0
    %161 = vmatpush2.msra.mxu0 0.0
    %162 = vmatprep.subr.mxu0 0.0
    %163 = vmatpush2.msra.mxu0 0.0
    %164 = vmatprep.subr.mxu0 0.0
    %165 = vmatpush2.msra.mxu0 0.0
    %166 = vmatprep.subr.mxu0 0.0
    %167 = vmatpush2.msra.mxu0 0.0
    %168 = vmatprep.subr.mxu0 0.0
    %169 = vmatpush2.msra.mxu0 0.0
    %170 = vmatprep.subr.mxu0 0.0
    %171 = vmatpush2.msra.mxu0 0.0
    %172 = vmatprep.subr.mxu0 0.0
    %173 = vmatpush2.msra.mxu0 0.0
    %174 = vmatprep.subr.mxu0 0.0
    %175 = vmatpush2.msra.mxu0 0.0
    %176 = vmatprep.subr.mxu0 0.0
    %177 = vmatpush2.msra.mxu0 0.0
    %178 = vmatprep.subr.mxu0 0.0
    %179 = vmatpush2.msra.mxu0 0.0
    %180 = vmatprep.mubr.f32.mxu0 0.0
    %181 = vmatmul.mubr.f32.gmra.mxu0 %v69
    %v182 = vpop.f32.mrf.mxu0
    %v183 = vadd.f32 0.0, %v182
    %v184 = vpop.f32.mrf.mxu0
    %185 = vmatprep.mubr.f32.mxu0 0.0
    %186 = vmatmul.mubr.f32.gmra.mxu0 %v72
    %v187 = vpop.f32.mrf.mxu0
    %v188 = vadd.f32 0.0, %v187
    %v189 = vpop.f32.mrf.mxu0
    %190 = vmatprep.mubr.f32.mxu0 0.0
    %191 = vmatmul.mubr.f32.gmra.mxu0 %v75
    %v192 = vpop.f32.mrf.mxu0
    %v193 = vadd.f32 0.0, %v192
    %v194 = vpop.f32.mrf.mxu0
    %195 = vmatprep.mubr.f32.mxu0 0.0
    %196 = vmatmul.mubr.f32.gmra.mxu0 %v78
    %v197 = vpop.f32.mrf.mxu0
    %v198 = vadd.f32 0.0, %v197
    %v199 = vpop.f32.mrf.mxu0
    %200 = vmatprep.mubr.f32.mxu0 0.0
    %201 = vmatmul.mubr.f32.gmra.mxu0 %v81
    %v202 = vpop.f32.mrf.mxu0
    %v203 = vadd.f32 0.0, %v202
    %v204 = vpop.f32.mrf.mxu0
    %205 = vmatprep.mubr.f32.mxu0 0.0
    %206 = vmatmul.mubr.f32.gmra.mxu0 %v84
    %v207 = vpop.f32.mrf.mxu0
    %v208 = vadd.f32 0.0, %v207
    %v209 = vpop.f32.mrf.mxu0
    %210 = vmatprep.mubr.f32.mxu0 0.0
    %211 = vmatmul.mubr.f32.gmra.mxu0 %v87
    %v212 = vpop.f32.mrf.mxu0
    %v213 = vadd.f32 0.0, %v212
    %v214 = vpop.f32.mrf.mxu0
    %215 = vmatprep.mubr.f32.mxu0 0.0
    %216 = vmatmul.mubr.f32.gmra.mxu0 %v90
    %v217 = vpop.f32.mrf.mxu0
    %v218 = vadd.f32 0.0, %v217
    %v219 = vpop.f32.mrf.mxu0
    %220 = vmatprep.mubr.f32.mxu0 0.0
    %221 = vmatmul.mubr.f32.gmra.mxu0 %v93
    %v222 = vpop.f32.mrf.mxu0
    %v223 = vadd.f32 0.0, %v222
    %v224 = vpop.f32.mrf.mxu0
    %225 = vmatprep.mubr.f32.mxu0 0.0
    %226 = vmatmul.mubr.f32.gmra.mxu0 %v96
    %v227 = vpop.f32.mrf.mxu0
    %v228 = vadd.f32 0.0, %v227
    %v229 = vpop.f32.mrf.mxu0
    %230 = vmatprep.mubr.f32.mxu0 0.0
    %231 = vmatmul.mubr.f32.gmra.mxu0 %v99
    %v232 = vpop.f32.mrf.mxu0
    %v233 = vadd.f32 0.0, %v232
    %v234 = vpop.f32.mrf.mxu0
    %235 = vmatprep.mubr.f32.mxu0 0.0
    %236 = vmatmul.mubr.f32.gmra.mxu0 %v102
    %v237 = vpop.f32.mrf.mxu0
    %v238 = vadd.f32 0.0, %v237
    %v239 = vpop.f32.mrf.mxu0
    %240 = vmatprep.mubr.f32.mxu0 0.0
    %241 = vmatmul.mubr.f32.gmra.mxu0 %v105
    %v242 = vpop.f32.mrf.mxu0
    %v243 = vadd.f32 0.0, %v242
    %v244 = vpop.f32.mrf.mxu0
    %245 = vmatprep.mubr.f32.mxu0 0.0
    %246 = vmatmul.mubr.f32.gmra.mxu0 %v108
    %v247 = vpop.f32.mrf.mxu0
    %v248 = vadd.f32 0.0, %v247
    %v249 = vpop.f32.mrf.mxu0
    %250 = vmatprep.mubr.f32.mxu0 0.0
    %251 = vmatmul.mubr.f32.gmra.mxu0 %v111
    %v252 = vpop.f32.mrf.mxu0
    %v253 = vadd.f32 0.0, %v252
    %v254 = vpop.f32.mrf.mxu0
    %255 = vmatprep.mubr.f32.mxu0 0.0
    %256 = vmatmul.mubr.f32.gmra.mxu0 %v114
    %v257 = vpop.f32.mrf.mxu0
    %v258 = vadd.f32 0.0, %v257
    %v259 = vpop.f32.mrf.mxu0
    %260 = vdwg.mxu0
    %v261 = vld [vmem:[%s2] sm:$0x1]
    %v262 = vld [vmem:[%s3] sm:$0x1]
    %263 = vmatprep.subr.mxu0 0.0
    %264 = vmatpush1.msra.mxu0 %v258
    %265 = vmatprep.subr.mxu0 0.0
    %266 = vmatpush1.msra.mxu0 %v253
    %267 = vmatprep.subr.mxu0 0.0
    %268 = vmatpush1.msra.mxu0 %v248
    %269 = vmatprep.subr.mxu0 0.0
    %270 = vmatpush1.msra.mxu0 %v243
    %271 = vmatprep.subr.mxu0 0.0
    %272 = vmatpush1.msra.mxu0 %v238
    %273 = vmatprep.subr.mxu0 0.0
    %274 = vmatpush1.msra.mxu0 %v233
    %275 = vmatprep.subr.mxu0 0.0
    %276 = vmatpush1.msra.mxu0 %v228
    %277 = vmatprep.subr.mxu0 0.0
    %278 = vmatpush1.msra.mxu0 %v223
    %279 = vmatprep.subr.mxu0 0.0
    %280 = vmatpush1.msra.mxu0 %v218
    %281 = vmatprep.subr.mxu0 0.0
    %282 = vmatpush1.msra.mxu0 %v213
    %283 = vmatprep.subr.mxu0 0.0
    %284 = vmatpush1.msra.mxu0 %v208
    %285 = vmatprep.subr.mxu0 0.0
    %286 = vmatpush1.msra.mxu0 %v203
    %287 = vmatprep.subr.mxu0 0.0
    %288 = vmatpush1.msra.mxu0 %v198
    %289 = vmatprep.subr.mxu0 0.0
    %290 = vmatpush1.msra.mxu0 %v193
    %291 = vmatprep.subr.mxu0 0.0
    %292 = vmatpush1.msra.mxu0 %v188
    %293 = vmatprep.subr.mxu0 0.0
    %294 = vmatpush1.msra.mxu0 %v183
    %295 = vmatprep.subr.mxu0 0.0
    %296 = vmatpush2.msra.mxu0 0.0
    %297 = vmatprep.subr.mxu0 0.0
    %298 = vmatpush2.msra.mxu0 0.0
    %299 = vmatprep.subr.mxu0 0.0
    %300 = vmatpush2.msra.mxu0 0.0
    %301 = vmatprep.subr.mxu0 0.0
    %302 = vmatpush2.msra.mxu0 0.0
    %303 = vmatprep.subr.mxu0 0.0
    %304 = vmatpush2.msra.mxu0 0.0
    %305 = vmatprep.subr.mxu0 0.0
    %306 = vmatpush2.msra.mxu0 0.0
    %307 = vmatprep.subr.mxu0 0.0
    %308 = vmatpush2.msra.mxu0 0.0
    %309 = vmatprep.subr.mxu0 0.0
    %310 = vmatpush2.msra.mxu0 0.0
    %311 = vmatprep.subr.mxu0 0.0
    %312 = vmatpush2.msra.mxu0 0.0
    %313 = vmatprep.subr.mxu0 0.0
    %314 = vmatpush2.msra.mxu0 0.0
    %315 = vmatprep.subr.mxu0 0.0
    %316 = vmatpush2.msra.mxu0 0.0
    %317 = vmatprep.subr.mxu0 0.0
    %318 = vmatpush2.msra.mxu0 0.0
    %319 = vmatprep.subr.mxu0 0.0
    %320 = vmatpush2.msra.mxu0 0.0
    %321 = vmatprep.subr.mxu0 0.0
    %322 = vmatpush2.msra.mxu0 0.0
    %323 = vmatprep.subr.mxu0 0.0
    %324 = vmatpush2.msra.mxu0 0.0
    %325 = vmatprep.subr.mxu0 0.0
    %326 = vmatpush2.msra.mxu0 0.0
    %327 = vmatprep.mubr.f32.mxu0 0.0
    %328 = vmatmul.mubr.f32.gmra.mxu0 1.0
    %v329 = vpop.f32.mrf.mxu0
    %v330 = vadd.f32 0.0, %v329
    %v331 = vpop.f32.mrf.mxu0
    %332 = vdwg.mxu0
    %v333 = vmul.f32 %v183, %v183
    %v334 = vmul.f32 %v188, %v188
    %v335 = vmul.f32 %v193, %v193
    %v336 = vmul.f32 %v198, %v198
    %v337 = vmul.f32 %v203, %v203
    %v338 = vmul.f32 %v208, %v208
    %v339 = vmul.f32 %v213, %v213
    %v340 = vmul.f32 %v218, %v218
    %v341 = vmul.f32 %v223, %v223
    %v342 = vmul.f32 %v228, %v228
    %v343 = vmul.f32 %v233, %v233
    %v344 = vmul.f32 %v238, %v238
    %v345 = vmul.f32 %v243, %v243
    %v346 = vmul.f32 %v248, %v248
    %v347 = vmul.f32 %v253, %v253
    %v348 = vmul.f32 %v258, %v258
    %349 = vmatprep.subr.mxu0 0.0
    %350 = vmatpush1.msra.mxu0 %v348
    %351 = vmatprep.subr.mxu0 0.0
    %352 = vmatpush1.msra.mxu0 %v347
    %353 = vmatprep.subr.mxu0 0.0
    %354 = vmatpush1.msra.mxu0 %v346
    %355 = vmatprep.subr.mxu0 0.0
    %356 = vmatpush1.msra.mxu0 %v345
    %357 = vmatprep.subr.mxu0 0.0
    %358 = vmatpush1.msra.mxu0 %v344
    %359 = vmatprep.subr.mxu0 0.0
    %360 = vmatpush1.msra.mxu0 %v343
    %361 = vmatprep.subr.mxu0 0.0
    %362 = vmatpush1.msra.mxu0 %v342
    %363 = vmatprep.subr.mxu0 0.0
    %364 = vmatpush1.msra.mxu0 %v341
    %365 = vmatprep.subr.mxu0 0.0
    %366 = vmatpush1.msra.mxu0 %v340
    %367 = vmatprep.subr.mxu0 0.0
    %368 = vmatpush1.msra.mxu0 %v339
    %369 = vmatprep.subr.mxu0 0.0
    %370 = vmatpush1.msra.mxu0 %v338
    %371 = vmatprep.subr.mxu0 0.0
    %372 = vmatpush1.msra.mxu0 %v337
    %373 = vmatprep.subr.mxu0 0.0
    %374 = vmatpush1.msra.mxu0 %v336
    %375 = vmatprep.subr.mxu0 0.0
    %376 = vmatpush1.msra.mxu0 %v335
    %377 = vmatprep.subr.mxu0 0.0
    %378 = vmatpush1.msra.mxu0 %v334
    %379 = vmatprep.subr.mxu0 0.0
    %380 = vmatpush1.msra.mxu0 %v333
    %381 = vmatprep.subr.mxu0 0.0
    %382 = vmatpush2.msra.mxu0 0.0
    %383 = vmatprep.subr.mxu0 0.0
    %384 = vmatpush2.msra.mxu0 0.0
    %385 = vmatprep.subr.mxu0 0.0
    %386 = vmatpush2.msra.mxu0 0.0
    %387 = vmatprep.subr.mxu0 0.0
    %388 = vmatpush2.msra.mxu0 0.0
    %389 = vmatprep.subr.mxu0 0.0
    %390 = vmatpush2.msra.mxu0 0.0
    %391 = vmatprep.subr.mxu0 0.0
    %392 = vmatpush2.msra.mxu0 0.0
    %393 = vmatprep.subr.mxu0 0.0
    %394 = vmatpush2.msra.mxu0 0.0
    %395 = vmatprep.subr.mxu0 0.0
    %396 = vmatpush2.msra.mxu0 0.0
    %397 = vmatprep.subr.mxu0 0.0
    %398 = vmatpush2.msra.mxu0 0.0
    %399 = vmatprep.subr.mxu0 0.0
    %400 = vmatpush2.msra.mxu0 0.0
    %401 = vmatprep.subr.mxu0 0.0
    %402 = vmatpush2.msra.mxu0 0.0
    %403 = vmatprep.subr.mxu0 0.0
    %404 = vmatpush2.msra.mxu0 0.0
    %405 = vmatprep.subr.mxu0 0.0
    %406 = vmatpush2.msra.mxu0 0.0
    %407 = vmatprep.subr.mxu0 0.0
    %408 = vmatpush2.msra.mxu0 0.0
    %409 = vmatprep.subr.mxu0 0.0
    %410 = vmatpush2.msra.mxu0 0.0
    %411 = vmatprep.subr.mxu0 0.0
    %412 = vmatpush2.msra.mxu0 0.0
    %413 = vmatprep.mubr.f32.mxu0 0.0
    %414 = vmatmul.mubr.f32.gmra.mxu0 1.0
    %v415 = vpop.f32.mrf.mxu0
    %v416 = vadd.f32 0.0, %v415
    %v417 = vpop.f32.mrf.mxu0
    %418 = vdwg.mxu0
    %v419 = vmul.f32 %v330, 0.0078125
    %v420 = vmul.f32 %v416, 0.0078125
    %v421 = vmul.f32 %v419, %v419
    %v422 = vsub.f32 %v420, %v421
    %v423 = vadd.f32 %v422, 1e-05
    %v424 = vrsqrt.pop %v423
    %v425 = vmul.f32 %v261, %v424
    %v426 = vmul.f32 %v419, %v425
    %v427 = vsub.f32 %v262, %v426
    %v429 = vlaneseq
    %v430 = vshrl.u32 %v429, 7
    %v431 = vsub.s32 0, %v430
    %v432 = vrot.slane %v425, %v431
    %v434 = vmul.f32 %v183, %v432
    %v435 = vmul.f32 %v188, %v432
    %v436 = vmul.f32 %v193, %v432
    %v437 = vmul.f32 %v198, %v432
    %v438 = vmul.f32 %v203, %v432
    %v439 = vmul.f32 %v208, %v432
    %v440 = vmul.f32 %v213, %v432
    %v441 = vmul.f32 %v218, %v432
    %v442 = vmul.f32 %v223, %v432
    %v443 = vmul.f32 %v228, %v432
    %v444 = vmul.f32 %v233, %v432
    %v445 = vmul.f32 %v238, %v432
    %v446 = vmul.f32 %v243, %v432
    %v447 = vmul.f32 %v248, %v432
    %v448 = vmul.f32 %v253, %v432
    %v449 = vmul.f32 %v258, %v432
    %v451 = vlaneseq
    %v452 = vshrl.u32 %v451, 7
    %v453 = vsub.s32 0, %v452
    %v454 = vrot.slane %v427, %v453
    %v456 = vadd.f32 %v434, %v454
    %v457 = vadd.f32 %v435, %v454
    %v458 = vadd.f32 %v436, %v454
    %v459 = vadd.f32 %v437, %v454
    %v460 = vadd.f32 %v438, %v454
    %v461 = vadd.f32 %v439, %v454
    %v462 = vadd.f32 %v440, %v454
    %v463 = vadd.f32 %v441, %v454
    %v464 = vadd.f32 %v442, %v454
    %v465 = vadd.f32 %v443, %v454
    %v466 = vadd.f32 %v444, %v454
    %v467 = vadd.f32 %v445, %v454
    %v468 = vadd.f32 %v446, %v454
    %v469 = vadd.f32 %v447, %v454
    %v470 = vadd.f32 %v448, %v454
    %v471 = vadd.f32 %v449, %v454
    %v472 = vmax.f32 %v456, 0.0
    %v473 = vmax.f32 %v457, 0.0
    %v474 = vmax.f32 %v458, 0.0
    %v475 = vmax.f32 %v459, 0.0
    %v476 = vmax.f32 %v460, 0.0
    %v477 = vmax.f32 %v461, 0.0
    %v478 = vmax.f32 %v462, 0.0
    %v479 = vmax.f32 %v463, 0.0
    %v480 = vmax.f32 %v464, 0.0
    %v481 = vmax.f32 %v465, 0.0
    %v482 = vmax.f32 %v466, 0.0
    %v483 = vmax.f32 %v467, 0.0
    %v484 = vmax.f32 %v468, 0.0
    %v485 = vmax.f32 %v469, 0.0
    %v486 = vmax.f32 %v470, 0.0
    %v487 = vmax.f32 %v471, 0.0
    %v488 = vld [vmem:[#allocation2] sm:$0xff]
    %v489 = vld [vmem:[#allocation2 + $0x8] sm:$0xff]
    %v490 = vld [vmem:[#allocation2 + $0x10] sm:$0xff]
    %v491 = vld [vmem:[#allocation2 + $0x18] sm:$0xff]
    %v492 = vld [vmem:[#allocation2 + $0x20] sm:$0xff]
    %v493 = vld [vmem:[#allocation2 + $0x28] sm:$0xff]
    %v494 = vld [vmem:[#allocation2 + $0x30] sm:$0xff]
    %v495 = vld [vmem:[#allocation2 + $0x38] sm:$0xff]
    %v496 = vld [vmem:[#allocation2 + $0x40] sm:$0xff]
    %v497 = vld [vmem:[#allocation2 + $0x48] sm:$0xff]
    %v498 = vld [vmem:[#allocation2 + $0x50] sm:$0xff]
    %v499 = vld [vmem:[#allocation2 + $0x58] sm:$0xff]
    %v500 = vld [vmem:[#allocation2 + $0x60] sm:$0xff]
    %v501 = vld [vmem:[#allocation2 + $0x68] sm:$0xff]
    %v502 = vld [vmem:[#allocation2 + $0x70] sm:$0xff]
    %v503 = vld [vmem:[#allocation2 + $0x78] sm:$0xff]
    %504 = vmatprep.subr.mxu0 0.0
    %505 = vmatpush1.msra.mxu0 %v503
    %506 = vmatprep.subr.mxu0 0.0
    %507 = vmatpush1.msra.mxu0 %v502
    %508 = vmatprep.subr.mxu0 0.0
    %509 = vmatpush1.msra.mxu0 %v501
    %510 = vmatprep.subr.mxu0 0.0
    %511 = vmatpush1.msra.mxu0 %v500
    %512 = vmatprep.subr.mxu0 0.0
    %513 = vmatpush1.msra.mxu0 %v499
    %514 = vmatprep.subr.mxu0 0.0
    %515 = vmatpush1.msra.mxu0 %v498
    %516 = vmatprep.subr.mxu0 0.0
    %517 = vmatpush1.msra.mxu0 %v497
    %518 = vmatprep.subr.mxu0 0.0
    %519 = vmatpush1.msra.mxu0 %v496
    %520 = vmatprep.subr.mxu0 0.0
    %521 = vmatpush1.msra.mxu0 %v495
    %522 = vmatprep.subr.mxu0 0.0
    %523 = vmatpush1.msra.mxu0 %v494
    %524 = vmatprep.subr.mxu0 0.0
    %525 = vmatpush1.msra.mxu0 %v493
    %526 = vmatprep.subr.mxu0 0.0
    %527 = vmatpush1.msra.mxu0 %v492
    %528 = vmatprep.subr.mxu0 0.0
    %529 = vmatpush1.msra.mxu0 %v491
    %530 = vmatprep.subr.mxu0 0.0
    %531 = vmatpush1.msra.mxu0 %v490
    %532 = vmatprep.subr.mxu0 0.0
    %533 = vmatpush1.msra.mxu0 %v489
    %534 = vmatprep.subr.mxu0 0.0
    %535 = vmatpush1.msra.mxu0 %v488
    %536 = vmatprep.subr.mxu0 0.0
    %537 = vmatpush2.msra.mxu0 0.0
    %538 = vmatprep.subr.mxu0 0.0
    %539 = vmatpush2.msra.mxu0 0.0
    %540 = vmatprep.subr.mxu0 0.0
    %541 = vmatpush2.msra.mxu0 0.0
    %542 = vmatprep.subr.mxu0 0.0
    %543 = vmatpush2.msra.mxu0 0.0
    %544 = vmatprep.subr.mxu0 0.0
    %545 = vmatpush2.msra.mxu0 0.0
    %546 = vmatprep.subr.mxu0 0.0
    %547 = vmatpush2.msra.mxu0 0.0
    %548 = vmatprep.subr.mxu0 0.0
    %549 = vmatpush2.msra.mxu0 0.0
    %550 = vmatprep.subr.mxu0 0.0
    %551 = vmatpush2.msra.mxu0 0.0
    %552 = vmatprep.subr.mxu0 0.0
    %553 = vmatpush2.msra.mxu0 0.0
    %554 = vmatprep.subr.mxu0 0.0
    %555 = vmatpush2.msra.mxu0 0.0
    %556 = vmatprep.subr.mxu0 0.0
    %557 = vmatpush2.msra.mxu0 0.0
    %558 = vmatprep.subr.mxu0 0.0
    %559 = vmatpush2.msra.mxu0 0.0
    %560 = vmatprep.subr.mxu0 0.0
    %561 = vmatpush2.msra.mxu0 0.0
    %562 = vmatprep.subr.mxu0 0.0
    %563 = vmatpush2.msra.mxu0 0.0
    %564 = vmatprep.subr.mxu0 0.0
    %565 = vmatpush2.msra.mxu0 0.0
    %566 = vmatprep.subr.mxu0 0.0
    %567 = vmatpush2.msra.mxu0 0.0
    %568 = vmatprep.mubr.f32.mxu0 0.0
    %569 = vmatmul.mubr.f32.gmra.mxu0 %v472
    %v570 = vpop.f32.mrf.mxu0
    %v571 = vadd.f32 0.0, %v570
    %v572 = vpop.f32.mrf.mxu0
    %573 = vmatprep.mubr.f32.mxu0 0.0
    %574 = vmatmul.mubr.f32.gmra.mxu0 %v473
    %v575 = vpop.f32.mrf.mxu0
    %v576 = vadd.f32 0.0, %v575
    %v577 = vpop.f32.mrf.mxu0
    %578 = vmatprep.mubr.f32.mxu0 0.0
    %579 = vmatmul.mubr.f32.gmra.mxu0 %v474
    %v580 = vpop.f32.mrf.mxu0
    %v581 = vadd.f32 0.0, %v580
    %v582 = vpop.f32.mrf.mxu0
    %583 = vmatprep.mubr.f32.mxu0 0.0
    %584 = vmatmul.mubr.f32.gmra.mxu0 %v475
    %v585 = vpop.f32.mrf.mxu0
    %v586 = vadd.f32 0.0, %v585
    %v587 = vpop.f32.mrf.mxu0
    %588 = vmatprep.mubr.f32.mxu0 0.0
    %589 = vmatmul.mubr.f32.gmra.mxu0 %v476
    %v590 = vpop.f32.mrf.mxu0
    %v591 = vadd.f32 0.0, %v590
    %v592 = vpop.f32.mrf.mxu0
    %593 = vmatprep.mubr.f32.mxu0 0.0
    %594 = vmatmul.mubr.f32.gmra.mxu0 %v477
    %v595 = vpop.f32.mrf.mxu0
    %v596 = vadd.f32 0.0, %v595
    %v597 = vpop.f32.mrf.mxu0
    %598 = vmatprep.mubr.f32.mxu0 0.0
    %599 = vmatmul.mubr.f32.gmra.mxu0 %v478
    %v600 = vpop.f32.mrf.mxu0
    %v601 = vadd.f32 0.0, %v600
    %v602 = vpop.f32.mrf.mxu0
    %603 = vmatprep.mubr.f32.mxu0 0.0
    %604 = vmatmul.mubr.f32.gmra.mxu0 %v479
    %v605 = vpop.f32.mrf.mxu0
    %v606 = vadd.f32 0.0, %v605
    %v607 = vpop.f32.mrf.mxu0
    %608 = vmatprep.mubr.f32.mxu0 0.0
    %609 = vmatmul.mubr.f32.gmra.mxu0 %v480
    %v610 = vpop.f32.mrf.mxu0
    %v611 = vadd.f32 0.0, %v610
    %v612 = vpop.f32.mrf.mxu0
    %613 = vmatprep.mubr.f32.mxu0 0.0
    %614 = vmatmul.mubr.f32.gmra.mxu0 %v481
    %v615 = vpop.f32.mrf.mxu0
    %v616 = vadd.f32 0.0, %v615
    %v617 = vpop.f32.mrf.mxu0
    %618 = vmatprep.mubr.f32.mxu0 0.0
    %619 = vmatmul.mubr.f32.gmra.mxu0 %v482
    %v620 = vpop.f32.mrf.mxu0
    %v621 = vadd.f32 0.0, %v620
    %v622 = vpop.f32.mrf.mxu0
    %623 = vmatprep.mubr.f32.mxu0 0.0
    %624 = vmatmul.mubr.f32.gmra.mxu0 %v483
    %v625 = vpop.f32.mrf.mxu0
    %v626 = vadd.f32 0.0, %v625
    %v627 = vpop.f32.mrf.mxu0
    %628 = vmatprep.mubr.f32.mxu0 0.0
    %629 = vmatmul.mubr.f32.gmra.mxu0 %v484
    %v630 = vpop.f32.mrf.mxu0
    %v631 = vadd.f32 0.0, %v630
    %v632 = vpop.f32.mrf.mxu0
    %633 = vmatprep.mubr.f32.mxu0 0.0
    %634 = vmatmul.mubr.f32.gmra.mxu0 %v485
    %v635 = vpop.f32.mrf.mxu0
    %v636 = vadd.f32 0.0, %v635
    %v637 = vpop.f32.mrf.mxu0
    %638 = vmatprep.mubr.f32.mxu0 0.0
    %639 = vmatmul.mubr.f32.gmra.mxu0 %v486
    %v640 = vpop.f32.mrf.mxu0
    %v641 = vadd.f32 0.0, %v640
    %v642 = vpop.f32.mrf.mxu0
    %643 = vmatprep.mubr.f32.mxu0 0.0
    %644 = vmatmul.mubr.f32.gmra.mxu0 %v487
    %v645 = vpop.f32.mrf.mxu0
    %v646 = vadd.f32 0.0, %v645
    %v647 = vpop.f32.mrf.mxu0
    %648 = vdwg.mxu0
    %v649 = vld [vmem:[%s5] sm:$0x1]
    %v650 = vld [vmem:[%s6] sm:$0x1]
    %651 = vmatprep.subr.mxu0 0.0
    %652 = vmatpush1.msra.mxu0 %v646
    %653 = vmatprep.subr.mxu0 0.0
    %654 = vmatpush1.msra.mxu0 %v641
    %655 = vmatprep.subr.mxu0 0.0
    %656 = vmatpush1.msra.mxu0 %v636
    %657 = vmatprep.subr.mxu0 0.0
    %658 = vmatpush1.msra.mxu0 %v631
    %659 = vmatprep.subr.mxu0 0.0
    %660 = vmatpush1.msra.mxu0 %v626
    %661 = vmatprep.subr.mxu0 0.0
    %662 = vmatpush1.msra.mxu0 %v621
    %663 = vmatprep.subr.mxu0 0.0
    %664 = vmatpush1.msra.mxu0 %v616
    %665 = vmatprep.subr.mxu0 0.0
    %666 = vmatpush1.msra.mxu0 %v611
    %667 = vmatprep.subr.mxu0 0.0
    %668 = vmatpush1.msra.mxu0 %v606
    %669 = vmatprep.subr.mxu0 0.0
    %670 = vmatpush1.msra.mxu0 %v601
    %671 = vmatprep.subr.mxu0 0.0
    %672 = vmatpush1.msra.mxu0 %v596
    %673 = vmatprep.subr.mxu0 0.0
    %674 = vmatpush1.msra.mxu0 %v591
    %675 = vmatprep.subr.mxu0 0.0
    %676 = vmatpush1.msra.mxu0 %v586
    %677 = vmatprep.subr.mxu0 0.0
    %678 = vmatpush1.msra.mxu0 %v581
    %679 = vmatprep.subr.mxu0 0.0
    %680 = vmatpush1.msra.mxu0 %v576
    %681 = vmatprep.subr.mxu0 0.0
    %682 = vmatpush1.msra.mxu0 %v571
    %683 = vmatprep.subr.mxu0 0.0
    %684 = vmatpush2.msra.mxu0 0.0
    %685 = vmatprep.subr.mxu0 0.0
    %686 = vmatpush2.msra.mxu0 0.0
    %687 = vmatprep.subr.mxu0 0.0
    %688 = vmatpush2.msra.mxu0 0.0
    %689 = vmatprep.subr.mxu0 0.0
    %690 = vmatpush2.msra.mxu0 0.0
    %691 = vmatprep.subr.mxu0 0.0
    %692 = vmatpush2.msra.mxu0 0.0
    %693 = vmatprep.subr.mxu0 0.0
    %694 = vmatpush2.msra.mxu0 0.0
    %695 = vmatprep.subr.mxu0 0.0
    %696 = vmatpush2.msra.mxu0 0.0
    %697 = vmatprep.subr.mxu0 0.0
    %698 = vmatpush2.msra.mxu0 0.0
    %699 = vmatprep.subr.mxu0 0.0
    %700 = vmatpush2.msra.mxu0 0.0
    %701 = vmatprep.subr.mxu0 0.0
    %702 = vmatpush2.msra.mxu0 0.0
    %703 = vmatprep.subr.mxu0 0.0
    %704 = vmatpush2.msra.mxu0 0.0
    %705 = vmatprep.subr.mxu0 0.0
    %706 = vmatpush2.msra.mxu0 0.0
    %707 = vmatprep.subr.mxu0 0.0
    %708 = vmatpush2.msra.mxu0 0.0
    %709 = vmatprep.subr.mxu0 0.0
    %710 = vmatpush2.msra.mxu0 0.0
    %711 = vmatprep.subr.mxu0 0.0
    %712 = vmatpush2.msra.mxu0 0.0
    %713 = vmatprep.subr.mxu0 0.0
    %714 = vmatpush2.msra.mxu0 0.0
    %715 = vmatprep.mubr.f32.mxu0 0.0
    %716 = vmatmul.mubr.f32.gmra.mxu0 1.0
    %v717 = vpop.f32.mrf.mxu0
    %v718 = vadd.f32 0.0, %v717
    %v719 = vpop.f32.mrf.mxu0
    %720 = vdwg.mxu0
    %v721 = vmul.f32 %v571, %v571
    %v722 = vmul.f32 %v576, %v576
    %v723 = vmul.f32 %v581, %v581
    %v724 = vmul.f32 %v586, %v586
    %v725 = vmul.f32 %v591, %v591
    %v726 = vmul.f32 %v596, %v596
    %v727 = vmul.f32 %v601, %v601
    %v728 = vmul.f32 %v606, %v606
    %v729 = vmul.f32 %v611, %v611
    %v730 = vmul.f32 %v616, %v616
    %v731 = vmul.f32 %v621, %v621
    %v732 = vmul.f32 %v626, %v626
    %v733 = vmul.f32 %v631, %v631
    %v734 = vmul.f32 %v636, %v636
    %v735 = vmul.f32 %v641, %v641
    %v736 = vmul.f32 %v646, %v646
    %737 = vmatprep.subr.mxu0 0.0
    %738 = vmatpush1.msra.mxu0 %v736
    %739 = vmatprep.subr.mxu0 0.0
    %740 = vmatpush1.msra.mxu0 %v735
    %741 = vmatprep.subr.mxu0 0.0
    %742 = vmatpush1.msra.mxu0 %v734
    %743 = vmatprep.subr.mxu0 0.0
    %744 = vmatpush1.msra.mxu0 %v733
    %745 = vmatprep.subr.mxu0 0.0
    %746 = vmatpush1.msra.mxu0 %v732
    %747 = vmatprep.subr.mxu0 0.0
    %748 = vmatpush1.msra.mxu0 %v731
    %749 = vmatprep.subr.mxu0 0.0
    %750 = vmatpush1.msra.mxu0 %v730
    %751 = vmatprep.subr.mxu0 0.0
    %752 = vmatpush1.msra.mxu0 %v729
    %753 = vmatprep.subr.mxu0 0.0
    %754 = vmatpush1.msra.mxu0 %v728
    %755 = vmatprep.subr.mxu0 0.0
    %756 = vmatpush1.msra.mxu0 %v727
    %757 = vmatprep.subr.mxu0 0.0
    %758 = vmatpush1.msra.mxu0 %v726
    %759 = vmatprep.subr.mxu0 0.0
    %760 = vmatpush1.msra.mxu0 %v725
    %761 = vmatprep.subr.mxu0 0.0
    %762 = vmatpush1.msra.mxu0 %v724
    %763 = vmatprep.subr.mxu0 0.0
    %764 = vmatpush1.msra.mxu0 %v723
    %765 = vmatprep.subr.mxu0 0.0
    %766 = vmatpush1.msra.mxu0 %v722
    %767 = vmatprep.subr.mxu0 0.0
    %768 = vmatpush1.msra.mxu0 %v721
    %769 = vmatprep.subr.mxu0 0.0
    %770 = vmatpush2.msra.mxu0 0.0
    %771 = vmatprep.subr.mxu0 0.0
    %772 = vmatpush2.msra.mxu0 0.0
    %773 = vmatprep.subr.mxu0 0.0
    %774 = vmatpush2.msra.mxu0 0.0
    %775 = vmatprep.subr.mxu0 0.0
    %776 = vmatpush2.msra.mxu0 0.0
    %777 = vmatprep.subr.mxu0 0.0
    %778 = vmatpush2.msra.mxu0 0.0
    %779 = vmatprep.subr.mxu0 0.0
    %780 = vmatpush2.msra.mxu0 0.0
    %781 = vmatprep.subr.mxu0 0.0
    %782 = vmatpush2.msra.mxu0 0.0
    %783 = vmatprep.subr.mxu0 0.0
    %784 = vmatpush2.msra.mxu0 0.0
    %785 = vmatprep.subr.mxu0 0.0
    %786 = vmatpush2.msra.mxu0 0.0
    %787 = vmatprep.subr.mxu0 0.0
    %788 = vmatpush2.msra.mxu0 0.0
    %789 = vmatprep.subr.mxu0 0.0
    %790 = vmatpush2.msra.mxu0 0.0
    %791 = vmatprep.subr.mxu0 0.0
    %792 = vmatpush2.msra.mxu0 0.0
    %793 = vmatprep.subr.mxu0 0.0
    %794 = vmatpush2.msra.mxu0 0.0
    %795 = vmatprep.subr.mxu0 0.0
    %796 = vmatpush2.msra.mxu0 0.0
    %797 = vmatprep.subr.mxu0 0.0
    %798 = vmatpush2.msra.mxu0 0.0
    %799 = vmatprep.subr.mxu0 0.0
    %800 = vmatpush2.msra.mxu0 0.0
    %801 = vmatprep.mubr.f32.mxu0 0.0
    %802 = vmatmul.mubr.f32.gmra.mxu0 1.0
    %v803 = vpop.f32.mrf.mxu0
    %v804 = vadd.f32 0.0, %v803
    %v805 = vpop.f32.mrf.mxu0
    %806 = vdwg.mxu0
    %v807 = vmul.f32 %v718, 0.0078125
    %v808 = vmul.f32 %v804, 0.0078125
    %v809 = vmul.f32 %v807, %v807
    %v810 = vsub.f32 %v808, %v809
    %v811 = vadd.f32 %v810, 1e-05
    %v812 = vrsqrt.pop %v811
    %v813 = vmul.f32 %v649, %v812
    %v814 = vmul.f32 %v807, %v813
    %v815 = vsub.f32 %v650, %v814
    %v817 = vlaneseq
    %v818 = vshrl.u32 %v817, 7
    %v819 = vsub.s32 0, %v818
    %v820 = vrot.slane %v813, %v819
    %v822 = vmul.f32 %v571, %v820
    %v823 = vmul.f32 %v576, %v820
    %v824 = vmul.f32 %v581, %v820
    %v825 = vmul.f32 %v586, %v820
    %v826 = vmul.f32 %v591, %v820
    %v827 = vmul.f32 %v596, %v820
    %v828 = vmul.f32 %v601, %v820
    %v829 = vmul.f32 %v606, %v820
    %v830 = vmul.f32 %v611, %v820
    %v831 = vmul.f32 %v616, %v820
    %v832 = vmul.f32 %v621, %v820
    %v833 = vmul.f32 %v626, %v820
    %v834 = vmul.f32 %v631, %v820
    %v835 = vmul.f32 %v636, %v820
    %v836 = vmul.f32 %v641, %v820
    %v837 = vmul.f32 %v646, %v820
    %v839 = vlaneseq
    %v840 = vshrl.u32 %v839, 7
    %v841 = vsub.s32 0, %v840
    %v842 = vrot.slane %v815, %v841
    %v844 = vadd.f32 %v822, %v842
    %v845 = vadd.f32 %v823, %v842
    %v846 = vadd.f32 %v824, %v842
    %v847 = vadd.f32 %v825, %v842
    %v848 = vadd.f32 %v826, %v842
    %v849 = vadd.f32 %v827, %v842
    %v850 = vadd.f32 %v828, %v842
    %v851 = vadd.f32 %v829, %v842
    %v852 = vadd.f32 %v830, %v842
    %v853 = vadd.f32 %v831, %v842
    %v854 = vadd.f32 %v832, %v842
    %v855 = vadd.f32 %v833, %v842
    %v856 = vadd.f32 %v834, %v842
    %v857 = vadd.f32 %v835, %v842
    %v858 = vadd.f32 %v836, %v842
    %v859 = vadd.f32 %v837, %v842
    %v860 = vmax.f32 %v844, 0.0
    %v861 = vmax.f32 %v845, 0.0
    %v862 = vmax.f32 %v846, 0.0
    %v863 = vmax.f32 %v847, 0.0
    %v864 = vmax.f32 %v848, 0.0
    %v865 = vmax.f32 %v849, 0.0
    %v866 = vmax.f32 %v850, 0.0
    %v867 = vmax.f32 %v851, 0.0
    %v868 = vmax.f32 %v852, 0.0
    %v869 = vmax.f32 %v853, 0.0
    %v870 = vmax.f32 %v854, 0.0
    %v871 = vmax.f32 %v855, 0.0
    %v872 = vmax.f32 %v856, 0.0
    %v873 = vmax.f32 %v857, 0.0
    %v874 = vmax.f32 %v858, 0.0
    %v875 = vmax.f32 %v859, 0.0
    %v876 = vadd.f32 %v472, %v860
    %v877 = vadd.f32 %v473, %v861
    %v878 = vadd.f32 %v474, %v862
    %v879 = vadd.f32 %v475, %v863
    %v880 = vadd.f32 %v476, %v864
    %v881 = vadd.f32 %v477, %v865
    %v882 = vadd.f32 %v478, %v866
    %v883 = vadd.f32 %v479, %v867
    %v884 = vadd.f32 %v480, %v868
    %v885 = vadd.f32 %v481, %v869
    %v886 = vadd.f32 %v482, %v870
    %v887 = vadd.f32 %v483, %v871
    %v888 = vadd.f32 %v484, %v872
    %v889 = vadd.f32 %v485, %v873
    %v890 = vadd.f32 %v486, %v874
    %v891 = vadd.f32 %v487, %v875
    %s892 = scalar_lea.vmem [#allocation2], 128
    %v893 = vld [vmem:[%s892] sm:$0xff]
    %v894 = vld [vmem:[%s892 + $0x8] sm:$0xff]
    %v895 = vld [vmem:[%s892 + $0x10] sm:$0xff]
    %v896 = vld [vmem:[%s892 + $0x18] sm:$0xff]
    %v897 = vld [vmem:[%s892 + $0x20] sm:$0xff]
    %v898 = vld [vmem:[%s892 + $0x28] sm:$0xff]
    %v899 = vld [vmem:[%s892 + $0x30] sm:$0xff]
    %v900 = vld [vmem:[%s892 + $0x38] sm:$0xff]
    %v901 = vld [vmem:[%s892 + $0x40] sm:$0xff]
    %v902 = vld [vmem:[%s892 + $0x48] sm:$0xff]
    %v903 = vld [vmem:[%s892 + $0x50] sm:$0xff]
    %v904 = vld [vmem:[%s892 + $0x58] sm:$0xff]
    %v905 = vld [vmem:[%s892 + $0x60] sm:$0xff]
    %v906 = vld [vmem:[%s892 + $0x68] sm:$0xff]
    %v907 = vld [vmem:[%s892 + $0x70] sm:$0xff]
    %v908 = vld [vmem:[%s892 + $0x78] sm:$0xff]
    %909 = vmatprep.subr.mxu0 0.0
    %910 = vmatpush1.msra.mxu0 %v908
    %911 = vmatprep.subr.mxu0 0.0
    %912 = vmatpush1.msra.mxu0 %v907
    %913 = vmatprep.subr.mxu0 0.0
    %914 = vmatpush1.msra.mxu0 %v906
    %915 = vmatprep.subr.mxu0 0.0
    %916 = vmatpush1.msra.mxu0 %v905
    %917 = vmatprep.subr.mxu0 0.0
    %918 = vmatpush1.msra.mxu0 %v904
    %919 = vmatprep.subr.mxu0 0.0
    %920 = vmatpush1.msra.mxu0 %v903
    %921 = vmatprep.subr.mxu0 0.0
    %922 = vmatpush1.msra.mxu0 %v902
    %923 = vmatprep.subr.mxu0 0.0
    %924 = vmatpush1.msra.mxu0 %v901
    %925 = vmatprep.subr.mxu0 0.0
    %926 = vmatpush1.msra.mxu0 %v900
    %927 = vmatprep.subr.mxu0 0.0
    %928 = vmatpush1.msra.mxu0 %v899
    %929 = vmatprep.subr.mxu0 0.0
    %930 = vmatpush1.msra.mxu0 %v898
    %931 = vmatprep.subr.mxu0 0.0
    %932 = vmatpush1.msra.mxu0 %v897
    %933 = vmatprep.subr.mxu0 0.0
    %934 = vmatpush1.msra.mxu0 %v896
    %935 = vmatprep.subr.mxu0 0.0
    %936 = vmatpush1.msra.mxu0 %v895
    %937 = vmatprep.subr.mxu0 0.0
    %938 = vmatpush1.msra.mxu0 %v894
    %939 = vmatprep.subr.mxu0 0.0
    %940 = vmatpush1.msra.mxu0 %v893
    %941 = vmatprep.subr.mxu0 0.0
    %942 = vmatpush2.msra.mxu0 0.0
    %943 = vmatprep.subr.mxu0 0.0
    %944 = vmatpush2.msra.mxu0 0.0
    %945 = vmatprep.subr.mxu0 0.0
    %946 = vmatpush2.msra.mxu0 0.0
    %947 = vmatprep.subr.mxu0 0.0
    %948 = vmatpush2.msra.mxu0 0.0
    %949 = vmatprep.subr.mxu0 0.0
    %950 = vmatpush2.msra.mxu0 0.0
    %951 = vmatprep.subr.mxu0 0.0
    %952 = vmatpush2.msra.mxu0 0.0
    %953 = vmatprep.subr.mxu0 0.0
    %954 = vmatpush2.msra.mxu0 0.0
    %955 = vmatprep.subr.mxu0 0.0
    %956 = vmatpush2.msra.mxu0 0.0
    %957 = vmatprep.subr.mxu0 0.0
    %958 = vmatpush2.msra.mxu0 0.0
    %959 = vmatprep.subr.mxu0 0.0
    %960 = vmatpush2.msra.mxu0 0.0
    %961 = vmatprep.subr.mxu0 0.0
    %962 = vmatpush2.msra.mxu0 0.0
    %963 = vmatprep.subr.mxu0 0.0
    %964 = vmatpush2.msra.mxu0 0.0
    %965 = vmatprep.subr.mxu0 0.0
    %966 = vmatpush2.msra.mxu0 0.0
    %967 = vmatprep.subr.mxu0 0.0
    %968 = vmatpush2.msra.mxu0 0.0
    %969 = vmatprep.subr.mxu0 0.0
    %970 = vmatpush2.msra.mxu0 0.0
    %971 = vmatprep.subr.mxu0 0.0
    %972 = vmatpush2.msra.mxu0 0.0
    %973 = vmatprep.mubr.f32.mxu0 0.0
    %974 = vmatmul.mubr.f32.gmra.mxu0 %v876
    %v975 = vpop.f32.mrf.mxu0
    %v976 = vadd.f32 0.0, %v975
    %v977 = vpop.f32.mrf.mxu0
    %978 = vmatprep.mubr.f32.mxu0 0.0
    %979 = vmatmul.mubr.f32.gmra.mxu0 %v877
    %v980 = vpop.f32.mrf.mxu0
    %v981 = vadd.f32 0.0, %v980
    %v982 = vpop.f32.mrf.mxu0
    %983 = vmatprep.mubr.f32.mxu0 0.0
    %984 = vmatmul.mubr.f32.gmra.mxu0 %v878
    %v985 = vpop.f32.mrf.mxu0
    %v986 = vadd.f32 0.0, %v985
    %v987 = vpop.f32.mrf.mxu0
    %988 = vmatprep.mubr.f32.mxu0 0.0
    %989 = vmatmul.mubr.f32.gmra.mxu0 %v879
    %v990 = vpop.f32.mrf.mxu0
    %v991 = vadd.f32 0.0, %v990
    %v992 = vpop.f32.mrf.mxu0
    %993 = vmatprep.mubr.f32.mxu0 0.0
    %994 = vmatmul.mubr.f32.gmra.mxu0 %v880
    %v995 = vpop.f32.mrf.mxu0
    %v996 = vadd.f32 0.0, %v995
    %v997 = vpop.f32.mrf.mxu0
    %998 = vmatprep.mubr.f32.mxu0 0.0
    %999 = vmatmul.mubr.f32.gmra.mxu0 %v881
    %v1000 = vpop.f32.mrf.mxu0
    %v1001 = vadd.f32 0.0, %v1000
    %v1002 = vpop.f32.mrf.mxu0
    %1003 = vmatprep.mubr.f32.mxu0 0.0
    %1004 = vmatmul.mubr.f32.gmra.mxu0 %v882
    %v1005 = vpop.f32.mrf.mxu0
    %v1006 = vadd.f32 0.0, %v1005
    %v1007 = vpop.f32.mrf.mxu0
    %1008 = vmatprep.mubr.f32.mxu0 0.0
    %1009 = vmatmul.mubr.f32.gmra.mxu0 %v883
    %v1010 = vpop.f32.mrf.mxu0
    %v1011 = vadd.f32 0.0, %v1010
    %v1012 = vpop.f32.mrf.mxu0
    %1013 = vmatprep.mubr.f32.mxu0 0.0
    %1014 = vmatmul.mubr.f32.gmra.mxu0 %v884
    %v1015 = vpop.f32.mrf.mxu0
    %v1016 = vadd.f32 0.0, %v1015
    %v1017 = vpop.f32.mrf.mxu0
    %1018 = vmatprep.mubr.f32.mxu0 0.0
    %1019 = vmatmul.mubr.f32.gmra.mxu0 %v885
    %v1020 = vpop.f32.mrf.mxu0
    %v1021 = vadd.f32 0.0, %v1020
    %v1022 = vpop.f32.mrf.mxu0
    %1023 = vmatprep.mubr.f32.mxu0 0.0
    %1024 = vmatmul.mubr.f32.gmra.mxu0 %v886
    %v1025 = vpop.f32.mrf.mxu0
    %v1026 = vadd.f32 0.0, %v1025
    %v1027 = vpop.f32.mrf.mxu0
    %1028 = vmatprep.mubr.f32.mxu0 0.0
    %1029 = vmatmul.mubr.f32.gmra.mxu0 %v887
    %v1030 = vpop.f32.mrf.mxu0
    %v1031 = vadd.f32 0.0, %v1030
    %v1032 = vpop.f32.mrf.mxu0
    %1033 = vmatprep.mubr.f32.mxu0 0.0
    %1034 = vmatmul.mubr.f32.gmra.mxu0 %v888
    %v1035 = vpop.f32.mrf.mxu0
    %v1036 = vadd.f32 0.0, %v1035
    %v1037 = vpop.f32.mrf.mxu0
    %1038 = vmatprep.mubr.f32.mxu0 0.0
    %1039 = vmatmul.mubr.f32.gmra.mxu0 %v889
    %v1040 = vpop.f32.mrf.mxu0
    %v1041 = vadd.f32 0.0, %v1040
    %v1042 = vpop.f32.mrf.mxu0
    %1043 = vmatprep.mubr.f32.mxu0 0.0
    %1044 = vmatmul.mubr.f32.gmra.mxu0 %v890
    %v1045 = vpop.f32.mrf.mxu0
    %v1046 = vadd.f32 0.0, %v1045
    %v1047 = vpop.f32.mrf.mxu0
    %1048 = vmatprep.mubr.f32.mxu0 0.0
    %1049 = vmatmul.mubr.f32.gmra.mxu0 %v891
    %v1050 = vpop.f32.mrf.mxu0
    %v1051 = vadd.f32 0.0, %v1050
    %v1052 = vpop.f32.mrf.mxu0
    %1053 = vdwg.mxu0
    %s1054 = scalar_lea.vmem %s5, 1
    %v1055 = vld [vmem:[%s1054] sm:$0x1]
    %s1056 = scalar_lea.vmem %s6, 1
    %v1057 = vld [vmem:[%s1056] sm:$0x1]
    %1058 = vmatprep.subr.mxu0 0.0
    %1059 = vmatpush1.msra.mxu0 %v1051
    %1060 = vmatprep.subr.mxu0 0.0
    %1061 = vmatpush1.msra.mxu0 %v1046
    %1062 = vmatprep.subr.mxu0 0.0
    %1063 = vmatpush1.msra.mxu0 %v1041
    %1064 = vmatprep.subr.mxu0 0.0
    %1065 = vmatpush1.msra.mxu0 %v1036
    %1066 = vmatprep.subr.mxu0 0.0
    %1067 = vmatpush1.msra.mxu0 %v1031
    %1068 = vmatprep.subr.mxu0 0.0
    %1069 = vmatpush1.msra.mxu0 %v1026
    %1070 = vmatprep.subr.mxu0 0.0
    %1071 = vmatpush1.msra.mxu0 %v1021
    %1072 = vmatprep.subr.mxu0 0.0
    %1073 = vmatpush1.msra.mxu0 %v1016
    %1074 = vmatprep.subr.mxu0 0.0
    %1075 = vmatpush1.msra.mxu0 %v1011
    %1076 = vmatprep.subr.mxu0 0.0
    %1077 = vmatpush1.msra.mxu0 %v1006
    %1078 = vmatprep.subr.mxu0 0.0
    %1079 = vmatpush1.msra.mxu0 %v1001
    %1080 = vmatprep.subr.mxu0 0.0
    %1081 = vmatpush1.msra.mxu0 %v996
    %1082 = vmatprep.subr.mxu0 0.0
    %1083 = vmatpush1.msra.mxu0 %v991
    %1084 = vmatprep.subr.mxu0 0.0
    %1085 = vmatpush1.msra.mxu0 %v986
    %1086 = vmatprep.subr.mxu0 0.0
    %1087 = vmatpush1.msra.mxu0 %v981
    %1088 = vmatprep.subr.mxu0 0.0
    %1089 = vmatpush1.msra.mxu0 %v976
    %1090 = vmatprep.subr.mxu0 0.0
    %1091 = vmatpush2.msra.mxu0 0.0
    %1092 = vmatprep.subr.mxu0 0.0
    %1093 = vmatpush2.msra.mxu0 0.0
    %1094 = vmatprep.subr.mxu0 0.0
    %1095 = vmatpush2.msra.mxu0 0.0
    %1096 = vmatprep.subr.mxu0 0.0
    %1097 = vmatpush2.msra.mxu0 0.0
    %1098 = vmatprep.subr.mxu0 0.0
    %1099 = vmatpush2.msra.mxu0 0.0
    %1100 = vmatprep.subr.mxu0 0.0
    %1101 = vmatpush2.msra.mxu0 0.0
    %1102 = vmatprep.subr.mxu0 0.0
    %1103 = vmatpush2.msra.mxu0 0.0
    %1104 = vmatprep.subr.mxu0 0.0
    %1105 = vmatpush2.msra.mxu0 0.0
    %1106 = vmatprep.subr.mxu0 0.0
    %1107 = vmatpush2.msra.mxu0 0.0
    %1108 = vmatprep.subr.mxu0 0.0
    %1109 = vmatpush2.msra.mxu0 0.0
    %1110 = vmatprep.subr.mxu0 0.0
    %1111 = vmatpush2.msra.mxu0 0.0
    %1112 = vmatprep.subr.mxu0 0.0
    %1113 = vmatpush2.msra.mxu0 0.0
    %1114 = vmatprep.subr.mxu0 0.0
    %1115 = vmatpush2.msra.mxu0 0.0
    %1116 = vmatprep.subr.mxu0 0.0
    %1117 = vmatpush2.msra.mxu0 0.0
    %1118 = vmatprep.subr.mxu0 0.0
    %1119 = vmatpush2.msra.mxu0 0.0
    %1120 = vmatprep.subr.mxu0 0.0
    %1121 = vmatpush2.msra.mxu0 0.0
    %1122 = vmatprep.mubr.f32.mxu0 0.0
    %1123 = vmatmul.mubr.f32.gmra.mxu0 1.0
    %v1124 = vpop.f32.mrf.mxu0
    %v1125 = vadd.f32 0.0, %v1124
    %v1126 = vpop.f32.mrf.mxu0
    %1127 = vdwg.mxu0
    %v1128 = vmul.f32 %v976, %v976
    %v1129 = vmul.f32 %v981, %v981
    %v1130 = vmul.f32 %v986, %v986
    %v1131 = vmul.f32 %v991, %v991
    %v1132 = vmul.f32 %v996, %v996
    %v1133 = vmul.f32 %v1001, %v1001
    %v1134 = vmul.f32 %v1006, %v1006
    %v1135 = vmul.f32 %v1011, %v1011
    %v1136 = vmul.f32 %v1016, %v1016
    %v1137 = vmul.f32 %v1021, %v1021
    %v1138 = vmul.f32 %v1026, %v1026
    %v1139 = vmul.f32 %v1031, %v1031
    %v1140 = vmul.f32 %v1036, %v1036
    %v1141 = vmul.f32 %v1041, %v1041
    %v1142 = vmul.f32 %v1046, %v1046
    %v1143 = vmul.f32 %v1051, %v1051
    %1144 = vmatprep.subr.mxu0 0.0
    %1145 = vmatpush1.msra.mxu0 %v1143
    %1146 = vmatprep.subr.mxu0 0.0
    %1147 = vmatpush1.msra.mxu0 %v1142
    %1148 = vmatprep.subr.mxu0 0.0
    %1149 = vmatpush1.msra.mxu0 %v1141
    %1150 = vmatprep.subr.mxu0 0.0
    %1151 = vmatpush1.msra.mxu0 %v1140
    %1152 = vmatprep.subr.mxu0 0.0
    %1153 = vmatpush1.msra.mxu0 %v1139
    %1154 = vmatprep.subr.mxu0 0.0
    %1155 = vmatpush1.msra.mxu0 %v1138
    %1156 = vmatprep.subr.mxu0 0.0
    %1157 = vmatpush1.msra.mxu0 %v1137
    %1158 = vmatprep.subr.mxu0 0.0
    %1159 = vmatpush1.msra.mxu0 %v1136
    %1160 = vmatprep.subr.mxu0 0.0
    %1161 = vmatpush1.msra.mxu0 %v1135
    %1162 = vmatprep.subr.mxu0 0.0
    %1163 = vmatpush1.msra.mxu0 %v1134
    %1164 = vmatprep.subr.mxu0 0.0
    %1165 = vmatpush1.msra.mxu0 %v1133
    %1166 = vmatprep.subr.mxu0 0.0
    %1167 = vmatpush1.msra.mxu0 %v1132
    %1168 = vmatprep.subr.mxu0 0.0
    %1169 = vmatpush1.msra.mxu0 %v1131
    %1170 = vmatprep.subr.mxu0 0.0
    %1171 = vmatpush1.msra.mxu0 %v1130
    %1172 = vmatprep.subr.mxu0 0.0
    %1173 = vmatpush1.msra.mxu0 %v1129
    %1174 = vmatprep.subr.mxu0 0.0
    %1175 = vmatpush1.msra.mxu0 %v1128
    %1176 = vmatprep.subr.mxu0 0.0
    %1177 = vmatpush2.msra.mxu0 0.0
    %1178 = vmatprep.subr.mxu0 0.0
    %1179 = vmatpush2.msra.mxu0 0.0
    %1180 = vmatprep.subr.mxu0 0.0
    %1181 = vmatpush2.msra.mxu0 0.0
    %1182 = vmatprep.subr.mxu0 0.0
    %1183 = vmatpush2.msra.mxu0 0.0
    %1184 = vmatprep.subr.mxu0 0.0
    %1185 = vmatpush2.msra.mxu0 0.0
    %1186 = vmatprep.subr.mxu0 0.0
    %1187 = vmatpush2.msra.mxu0 0.0
    %1188 = vmatprep.subr.mxu0 0.0
    %1189 = vmatpush2.msra.mxu0 0.0
    %1190 = vmatprep.subr.mxu0 0.0
    %1191 = vmatpush2.msra.mxu0 0.0
    %1192 = vmatprep.subr.mxu0 0.0
    %1193 = vmatpush2.msra.mxu0 0.0
    %1194 = vmatprep.subr.mxu0 0.0
    %1195 = vmatpush2.msra.mxu0 0.0
    %1196 = vmatprep.subr.mxu0 0.0
    %1197 = vmatpush2.msra.mxu0 0.0
    %1198 = vmatprep.subr.mxu0 0.0
    %1199 = vmatpush2.msra.mxu0 0.0
    %1200 = vmatprep.subr.mxu0 0.0
    %1201 = vmatpush2.msra.mxu0 0.0
    %1202 = vmatprep.subr.mxu0 0.0
    %1203 = vmatpush2.msra.mxu0 0.0
    %1204 = vmatprep.subr.mxu0 0.0
    %1205 = vmatpush2.msra.mxu0 0.0
    %1206 = vmatprep.subr.mxu0 0.0
    %1207 = vmatpush2.msra.mxu0 0.0
    %1208 = vmatprep.mubr.f32.mxu0 0.0
    %1209 = vmatmul.mubr.f32.gmra.mxu0 1.0
    %v1210 = vpop.f32.mrf.mxu0
    %v1211 = vadd.f32 0.0, %v1210
    %v1212 = vpop.f32.mrf.mxu0
    %1213 = vdwg.mxu0
    %v1214 = vmul.f32 %v1125, 0.0078125
    %v1215 = vmul.f32 %v1211, 0.0078125
    %v1216 = vmul.f32 %v1214, %v1214
    %v1217 = vsub.f32 %v1215, %v1216
    %v1218 = vadd.f32 %v1217, 1e-05
    %v1219 = vrsqrt.pop %v1218
    %v1220 = vmul.f32 %v1055, %v1219
    %v1221 = vmul.f32 %v1214, %v1220
    %v1222 = vsub.f32 %v1057, %v1221
    %v1224 = vlaneseq
    %v1225 = vshrl.u32 %v1224, 7
    %v1226 = vsub.s32 0, %v1225
    %v1227 = vrot.slane %v1220, %v1226
    %v1229 = vmul.f32 %v976, %v1227
    %v1230 = vmul.f32 %v981, %v1227
    %v1231 = vmul.f32 %v986, %v1227
    %v1232 = vmul.f32 %v991, %v1227
    %v1233 = vmul.f32 %v996, %v1227
    %v1234 = vmul.f32 %v1001, %v1227
    %v1235 = vmul.f32 %v1006, %v1227
    %v1236 = vmul.f32 %v1011, %v1227
    %v1237 = vmul.f32 %v1016, %v1227
    %v1238 = vmul.f32 %v1021, %v1227
    %v1239 = vmul.f32 %v1026, %v1227
    %v1240 = vmul.f32 %v1031, %v1227
    %v1241 = vmul.f32 %v1036, %v1227
    %v1242 = vmul.f32 %v1041, %v1227
    %v1243 = vmul.f32 %v1046, %v1227
    %v1244 = vmul.f32 %v1051, %v1227
    %v1246 = vlaneseq
    %v1247 = vshrl.u32 %v1246, 7
    %v1248 = vsub.s32 0, %v1247
    %v1249 = vrot.slane %v1222, %v1248
    %v1251 = vadd.f32 %v1229, %v1249
    %v1252 = vadd.f32 %v1230, %v1249
    %v1253 = vadd.f32 %v1231, %v1249
    %v1254 = vadd.f32 %v1232, %v1249
    %v1255 = vadd.f32 %v1233, %v1249
    %v1256 = vadd.f32 %v1234, %v1249
    %v1257 = vadd.f32 %v1235, %v1249
    %v1258 = vadd.f32 %v1236, %v1249
    %v1259 = vadd.f32 %v1237, %v1249
    %v1260 = vadd.f32 %v1238, %v1249
    %v1261 = vadd.f32 %v1239, %v1249
    %v1262 = vadd.f32 %v1240, %v1249
    %v1263 = vadd.f32 %v1241, %v1249
    %v1264 = vadd.f32 %v1242, %v1249
    %v1265 = vadd.f32 %v1243, %v1249
    %v1266 = vadd.f32 %v1244, %v1249
    %v1267 = vmax.f32 %v1251, 0.0
    %v1268 = vmax.f32 %v1252, 0.0
    %v1269 = vmax.f32 %v1253, 0.0
    %v1270 = vmax.f32 %v1254, 0.0
    %v1271 = vmax.f32 %v1255, 0.0
    %v1272 = vmax.f32 %v1256, 0.0
    %v1273 = vmax.f32 %v1257, 0.0
    %v1274 = vmax.f32 %v1258, 0.0
    %v1275 = vmax.f32 %v1259, 0.0
    %v1276 = vmax.f32 %v1260, 0.0
    %v1277 = vmax.f32 %v1261, 0.0
    %v1278 = vmax.f32 %v1262, 0.0
    %v1279 = vmax.f32 %v1263, 0.0
    %v1280 = vmax.f32 %v1264, 0.0
    %v1281 = vmax.f32 %v1265, 0.0
    %v1282 = vmax.f32 %v1266, 0.0
    %v1283 = vadd.f32 %v876, %v1267
    %v1284 = vadd.f32 %v877, %v1268
    %v1285 = vadd.f32 %v878, %v1269
    %v1286 = vadd.f32 %v879, %v1270
    %v1287 = vadd.f32 %v880, %v1271
    %v1288 = vadd.f32 %v881, %v1272
    %v1289 = vadd.f32 %v882, %v1273
    %v1290 = vadd.f32 %v883, %v1274
    %v1291 = vadd.f32 %v884, %v1275
    %v1292 = vadd.f32 %v885, %v1276
    %v1293 = vadd.f32 %v886, %v1277
    %v1294 = vadd.f32 %v887, %v1278
    %v1295 = vadd.f32 %v888, %v1279
    %v1296 = vadd.f32 %v889, %v1280
    %v1297 = vadd.f32 %v890, %v1281
    %v1298 = vadd.f32 %v891, %v1282
    %s1299 = scalar_lea.vmem [#allocation2], 256
    %v1300 = vld [vmem:[%s1299] sm:$0xff]
    %v1301 = vld [vmem:[%s1299 + $0x8] sm:$0xff]
    %v1302 = vld [vmem:[%s1299 + $0x10] sm:$0xff]
    %v1303 = vld [vmem:[%s1299 + $0x18] sm:$0xff]
    %v1304 = vld [vmem:[%s1299 + $0x20] sm:$0xff]
    %v1305 = vld [vmem:[%s1299 + $0x28] sm:$0xff]
    %v1306 = vld [vmem:[%s1299 + $0x30] sm:$0xff]
    %v1307 = vld [vmem:[%s1299 + $0x38] sm:$0xff]
    %v1308 = vld [vmem:[%s1299 + $0x40] sm:$0xff]
    %v1309 = vld [vmem:[%s1299 + $0x48] sm:$0xff]
    %v1310 = vld [vmem:[%s1299 + $0x50] sm:$0xff]
    %v1311 = vld [vmem:[%s1299 + $0x58] sm:$0xff]
    %v1312 = vld [vmem:[%s1299 + $0x60] sm:$0xff]
    %v1313 = vld [vmem:[%s1299 + $0x68] sm:$0xff]
    %v1314 = vld [vmem:[%s1299 + $0x70] sm:$0xff]
    %v1315 = vld [vmem:[%s1299 + $0x78] sm:$0xff]
    %1316 = vmatprep.subr.mxu0 0.0
    %1317 = vmatpush1.msra.mxu0 %v1315
    %1318 = vmatprep.subr.mxu0 0.0
    %1319 = vmatpush1.msra.mxu0 %v1314
    %1320 = vmatprep.subr.mxu0 0.0
    %1321 = vmatpush1.msra.mxu0 %v1313
    %1322 = vmatprep.subr.mxu0 0.0
    %1323 = vmatpush1.msra.mxu0 %v1312
    %1324 = vmatprep.subr.mxu0 0.0
    %1325 = vmatpush1.msra.mxu0 %v1311
    %1326 = vmatprep.subr.mxu0 0.0
    %1327 = vmatpush1.msra.mxu0 %v1310
    %1328 = vmatprep.subr.mxu0 0.0
    %1329 = vmatpush1.msra.mxu0 %v1309
    %1330 = vmatprep.subr.mxu0 0.0
    %1331 = vmatpush1.msra.mxu0 %v1308
    %1332 = vmatprep.subr.mxu0 0.0
    %1333 = vmatpush1.msra.mxu0 %v1307
    %1334 = vmatprep.subr.mxu0 0.0
    %1335 = vmatpush1.msra.mxu0 %v1306
    %1336 = vmatprep.subr.mxu0 0.0
    %1337 = vmatpush1.msra.mxu0 %v1305
    %1338 = vmatprep.subr.mxu0 0.0
    %1339 = vmatpush1.msra.mxu0 %v1304
    %1340 = vmatprep.subr.mxu0 0.0
    %1341 = vmatpush1.msra.mxu0 %v1303
    %1342 = vmatprep.subr.mxu0 0.0
    %1343 = vmatpush1.msra.mxu0 %v1302
    %1344 = vmatprep.subr.mxu0 0.0
    %1345 = vmatpush1.msra.mxu0 %v1301
    %1346 = vmatprep.subr.mxu0 0.0
    %1347 = vmatpush1.msra.mxu0 %v1300
    %1348 = vmatprep.subr.mxu0 0.0
    %1349 = vmatpush2.msra.mxu0 0.0
    %1350 = vmatprep.subr.mxu0 0.0
    %1351 = vmatpush2.msra.mxu0 0.0
    %1352 = vmatprep.subr.mxu0 0.0
    %1353 = vmatpush2.msra.mxu0 0.0
    %1354 = vmatprep.subr.mxu0 0.0
    %1355 = vmatpush2.msra.mxu0 0.0
    %1356 = vmatprep.subr.mxu0 0.0
    %1357 = vmatpush2.msra.mxu0 0.0
    %1358 = vmatprep.subr.mxu0 0.0
    %1359 = vmatpush2.msra.mxu0 0.0
    %1360 = vmatprep.subr.mxu0 0.0
    %1361 = vmatpush2.msra.mxu0 0.0
    %1362 = vmatprep.subr.mxu0 0.0
    %1363 = vmatpush2.msra.mxu0 0.0
    %1364 = vmatprep.subr.mxu0 0.0
    %1365 = vmatpush2.msra.mxu0 0.0
    %1366 = vmatprep.subr.mxu0 0.0
    %1367 = vmatpush2.msra.mxu0 0.0
    %1368 = vmatprep.subr.mxu0 0.0
    %1369 = vmatpush2.msra.mxu0 0.0
    %1370 = vmatprep.subr.mxu0 0.0
    %1371 = vmatpush2.msra.mxu0 0.0
    %1372 = vmatprep.subr.mxu0 0.0
    %1373 = vmatpush2.msra.mxu0 0.0
    %1374 = vmatprep.subr.mxu0 0.0
    %1375 = vmatpush2.msra.mxu0 0.0
    %1376 = vmatprep.subr.mxu0 0.0
    %1377 = vmatpush2.msra.mxu0 0.0
    %1378 = vmatprep.subr.mxu0 0.0
    %1379 = vmatpush2.msra.mxu0 0.0
    %1380 = vmatprep.mubr.f32.mxu0 0.0
    %1381 = vmatmul.mubr.f32.gmra.mxu0 %v1283
    %v1382 = vpop.f32.mrf.mxu0
    %v1383 = vadd.f32 0.0, %v1382
    %v1384 = vpop.f32.mrf.mxu0
    %1385 = vmatprep.mubr.f32.mxu0 0.0
    %1386 = vmatmul.mubr.f32.gmra.mxu0 %v1284
    %v1387 = vpop.f32.mrf.mxu0
    %v1388 = vadd.f32 0.0, %v1387
    %v1389 = vpop.f32.mrf.mxu0
    %1390 = vmatprep.mubr.f32.mxu0 0.0
    %1391 = vmatmul.mubr.f32.gmra.mxu0 %v1285
    %v1392 = vpop.f32.mrf.mxu0
    %v1393 = vadd.f32 0.0, %v1392
    %v1394 = vpop.f32.mrf.mxu0
    %1395 = vmatprep.mubr.f32.mxu0 0.0
    %1396 = vmatmul.mubr.f32.gmra.mxu0 %v1286
    %v1397 = vpop.f32.mrf.mxu0
    %v1398 = vadd.f32 0.0, %v1397
    %v1399 = vpop.f32.mrf.mxu0
    %1400 = vmatprep.mubr.f32.mxu0 0.0
    %1401 = vmatmul.mubr.f32.gmra.mxu0 %v1287
    %v1402 = vpop.f32.mrf.mxu0
    %v1403 = vadd.f32 0.0, %v1402
    %v1404 = vpop.f32.mrf.mxu0
    %1405 = vmatprep.mubr.f32.mxu0 0.0
    %1406 = vmatmul.mubr.f32.gmra.mxu0 %v1288
    %v1407 = vpop.f32.mrf.mxu0
    %v1408 = vadd.f32 0.0, %v1407
    %v1409 = vpop.f32.mrf.mxu0
    %1410 = vmatprep.mubr.f32.mxu0 0.0
    %1411 = vmatmul.mubr.f32.gmra.mxu0 %v1289
    %v1412 = vpop.f32.mrf.mxu0
    %v1413 = vadd.f32 0.0, %v1412
    %v1414 = vpop.f32.mrf.mxu0
    %1415 = vmatprep.mubr.f32.mxu0 0.0
    %1416 = vmatmul.mubr.f32.gmra.mxu0 %v1290
    %v1417 = vpop.f32.mrf.mxu0
    %v1418 = vadd.f32 0.0, %v1417
    %v1419 = vpop.f32.mrf.mxu0
    %1420 = vmatprep.mubr.f32.mxu0 0.0
    %1421 = vmatmul.mubr.f32.gmra.mxu0 %v1291
    %v1422 = vpop.f32.mrf.mxu0
    %v1423 = vadd.f32 0.0, %v1422
    %v1424 = vpop.f32.mrf.mxu0
    %1425 = vmatprep.mubr.f32.mxu0 0.0
    %1426 = vmatmul.mubr.f32.gmra.mxu0 %v1292
    %v1427 = vpop.f32.mrf.mxu0
    %v1428 = vadd.f32 0.0, %v1427
    %v1429 = vpop.f32.mrf.mxu0
    %1430 = vmatprep.mubr.f32.mxu0 0.0
    %1431 = vmatmul.mubr.f32.gmra.mxu0 %v1293
    %v1432 = vpop.f32.mrf.mxu0
    %v1433 = vadd.f32 0.0, %v1432
    %v1434 = vpop.f32.mrf.mxu0
    %1435 = vmatprep.mubr.f32.mxu0 0.0
    %1436 = vmatmul.mubr.f32.gmra.mxu0 %v1294
    %v1437 = vpop.f32.mrf.mxu0
    %v1438 = vadd.f32 0.0, %v1437
    %v1439 = vpop.f32.mrf.mxu0
    %1440 = vmatprep.mubr.f32.mxu0 0.0
    %1441 = vmatmul.mubr.f32.gmra.mxu0 %v1295
    %v1442 = vpop.f32.mrf.mxu0
    %v1443 = vadd.f32 0.0, %v1442
    %v1444 = vpop.f32.mrf.mxu0
    %1445 = vmatprep.mubr.f32.mxu0 0.0
    %1446 = vmatmul.mubr.f32.gmra.mxu0 %v1296
    %v1447 = vpop.f32.mrf.mxu0
    %v1448 = vadd.f32 0.0, %v1447
    %v1449 = vpop.f32.mrf.mxu0
    %1450 = vmatprep.mubr.f32.mxu0 0.0
    %1451 = vmatmul.mubr.f32.gmra.mxu0 %v1297
    %v1452 = vpop.f32.mrf.mxu0
    %v1453 = vadd.f32 0.0, %v1452
    %v1454 = vpop.f32.mrf.mxu0
    %1455 = vmatprep.mubr.f32.mxu0 0.0
    %1456 = vmatmul.mubr.f32.gmra.mxu0 %v1298
    %v1457 = vpop.f32.mrf.mxu0
    %v1458 = vadd.f32 0.0, %v1457
    %v1459 = vpop.f32.mrf.mxu0
    %1460 = vdwg.mxu0
    %s1461 = scalar_lea.vmem %s5, 2
    %v1462 = vld [vmem:[%s1461] sm:$0x1]
    %s1463 = scalar_lea.vmem %s6, 2
    %v1464 = vld [vmem:[%s1463] sm:$0x1]
    %1465 = vmatprep.subr.mxu0 0.0
    %1466 = vmatpush1.msra.mxu0 %v1458
    %1467 = vmatprep.subr.mxu0 0.0
    %1468 = vmatpush1.msra.mxu0 %v1453
    %1469 = vmatprep.subr.mxu0 0.0
    %1470 = vmatpush1.msra.mxu0 %v1448
    %1471 = vmatprep.subr.mxu0 0.0
    %1472 = vmatpush1.msra.mxu0 %v1443
    %1473 = vmatprep.subr.mxu0 0.0
    %1474 = vmatpush1.msra.mxu0 %v1438
    %1475 = vmatprep.subr.mxu0 0.0
    %1476 = vmatpush1.msra.mxu0 %v1433
    %1477 = vmatprep.subr.mxu0 0.0
    %1478 = vmatpush1.msra.mxu0 %v1428
    %1479 = vmatprep.subr.mxu0 0.0
    %1480 = vmatpush1.msra.mxu0 %v1423
    %1481 = vmatprep.subr.mxu0 0.0
    %1482 = vmatpush1.msra.mxu0 %v1418
    %1483 = vmatprep.subr.mxu0 0.0
    %1484 = vmatpush1.msra.mxu0 %v1413
    %1485 = vmatprep.subr.mxu0 0.0
    %1486 = vmatpush1.msra.mxu0 %v1408
    %1487 = vmatprep.subr.mxu0 0.0
    %1488 = vmatpush1.msra.mxu0 %v1403
    %1489 = vmatprep.subr.mxu0 0.0
    %1490 = vmatpush1.msra.mxu0 %v1398
    %1491 = vmatprep.subr.mxu0 0.0
    %1492 = vmatpush1.msra.mxu0 %v1393
    %1493 = vmatprep.subr.mxu0 0.0
    %1494 = vmatpush1.msra.mxu0 %v1388
    %1495 = vmatprep.subr.mxu0 0.0
    %1496 = vmatpush1.msra.mxu0 %v1383
    %1497 = vmatprep.subr.mxu0 0.0
    %1498 = vmatpush2.msra.mxu0 0.0
    %1499 = vmatprep.subr.mxu0 0.0
    %1500 = vmatpush2.msra.mxu0 0.0
    %1501 = vmatprep.subr.mxu0 0.0
    %1502 = vmatpush2.msra.mxu0 0.0
    %1503 = vmatprep.subr.mxu0 0.0
    %1504 = vmatpush2.msra.mxu0 0.0
    %1505 = vmatprep.subr.mxu0 0.0
    %1506 = vmatpush2.msra.mxu0 0.0
    %1507 = vmatprep.subr.mxu0 0.0
    %1508 = vmatpush2.msra.mxu0 0.0
    %1509 = vmatprep.subr.mxu0 0.0
    %1510 = vmatpush2.msra.mxu0 0.0
    %1511 = vmatprep.subr.mxu0 0.0
    %1512 = vmatpush2.msra.mxu0 0.0
    %1513 = vmatprep.subr.mxu0 0.0
    %1514 = vmatpush2.msra.mxu0 0.0
    %1515 = vmatprep.subr.mxu0 0.0
    %1516 = vmatpush2.msra.mxu0 0.0
    %1517 = vmatprep.subr.mxu0 0.0
    %1518 = vmatpush2.msra.mxu0 0.0
    %1519 = vmatprep.subr.mxu0 0.0
    %1520 = vmatpush2.msra.mxu0 0.0
    %1521 = vmatprep.subr.mxu0 0.0
    %1522 = vmatpush2.msra.mxu0 0.0
    %1523 = vmatprep.subr.mxu0 0.0
    %1524 = vmatpush2.msra.mxu0 0.0
    %1525 = vmatprep.subr.mxu0 0.0
    %1526 = vmatpush2.msra.mxu0 0.0
    %1527 = vmatprep.subr.mxu0 0.0
    %1528 = vmatpush2.msra.mxu0 0.0
    %1529 = vmatprep.mubr.f32.mxu0 0.0
    %1530 = vmatmul.mubr.f32.gmra.mxu0 1.0
    %v1531 = vpop.f32.mrf.mxu0
    %v1532 = vadd.f32 0.0, %v1531
    %v1533 = vpop.f32.mrf.mxu0
    %1534 = vdwg.mxu0
    %v1535 = vmul.f32 %v1383, %v1383
    %v1536 = vmul.f32 %v1388, %v1388
    %v1537 = vmul.f32 %v1393, %v1393
    %v1538 = vmul.f32 %v1398, %v1398
    %v1539 = vmul.f32 %v1403, %v1403
    %v1540 = vmul.f32 %v1408, %v1408
    %v1541 = vmul.f32 %v1413, %v1413
    %v1542 = vmul.f32 %v1418, %v1418
    %v1543 = vmul.f32 %v1423, %v1423
    %v1544 = vmul.f32 %v1428, %v1428
    %v1545 = vmul.f32 %v1433, %v1433
    %v1546 = vmul.f32 %v1438, %v1438
    %v1547 = vmul.f32 %v1443, %v1443
    %v1548 = vmul.f32 %v1448, %v1448
    %v1549 = vmul.f32 %v1453, %v1453
    %v1550 = vmul.f32 %v1458, %v1458
    %1551 = vmatprep.subr.mxu0 0.0
    %1552 = vmatpush1.msra.mxu0 %v1550
    %1553 = vmatprep.subr.mxu0 0.0
    %1554 = vmatpush1.msra.mxu0 %v1549
    %1555 = vmatprep.subr.mxu0 0.0
    %1556 = vmatpush1.msra.mxu0 %v1548
    %1557 = vmatprep.subr.mxu0 0.0
    %1558 = vmatpush1.msra.mxu0 %v1547
    %1559 = vmatprep.subr.mxu0 0.0
    %1560 = vmatpush1.msra.mxu0 %v1546
    %1561 = vmatprep.subr.mxu0 0.0
    %1562 = vmatpush1.msra.mxu0 %v1545
    %1563 = vmatprep.subr.mxu0 0.0
    %1564 = vmatpush1.msra.mxu0 %v1544
    %1565 = vmatprep.subr.mxu0 0.0
    %1566 = vmatpush1.msra.mxu0 %v1543
    %1567 = vmatprep.subr.mxu0 0.0
    %1568 = vmatpush1.msra.mxu0 %v1542
    %1569 = vmatprep.subr.mxu0 0.0
    %1570 = vmatpush1.msra.mxu0 %v1541
    %1571 = vmatprep.subr.mxu0 0.0
    %1572 = vmatpush1.msra.mxu0 %v1540
    %1573 = vmatprep.subr.mxu0 0.0
    %1574 = vmatpush1.msra.mxu0 %v1539
    %1575 = vmatprep.subr.mxu0 0.0
    %1576 = vmatpush1.msra.mxu0 %v1538
    %1577 = vmatprep.subr.mxu0 0.0
    %1578 = vmatpush1.msra.mxu0 %v1537
    %1579 = vmatprep.subr.mxu0 0.0
    %1580 = vmatpush1.msra.mxu0 %v1536
    %1581 = vmatprep.subr.mxu0 0.0
    %1582 = vmatpush1.msra.mxu0 %v1535
    %1583 = vmatprep.subr.mxu0 0.0
    %1584 = vmatpush2.msra.mxu0 0.0
    %1585 = vmatprep.subr.mxu0 0.0
    %1586 = vmatpush2.msra.mxu0 0.0
    %1587 = vmatprep.subr.mxu0 0.0
    %1588 = vmatpush2.msra.mxu0 0.0
    %1589 = vmatprep.subr.mxu0 0.0
    %1590 = vmatpush2.msra.mxu0 0.0
    %1591 = vmatprep.subr.mxu0 0.0
    %1592 = vmatpush2.msra.mxu0 0.0
    %1593 = vmatprep.subr.mxu0 0.0
    %1594 = vmatpush2.msra.mxu0 0.0
    %1595 = vmatprep.subr.mxu0 0.0
    %1596 = vmatpush2.msra.mxu0 0.0
    %1597 = vmatprep.subr.mxu0 0.0
    %1598 = vmatpush2.msra.mxu0 0.0
    %1599 = vmatprep.subr.mxu0 0.0
    %1600 = vmatpush2.msra.mxu0 0.0
    %1601 = vmatprep.subr.mxu0 0.0
    %1602 = vmatpush2.msra.mxu0 0.0
    %1603 = vmatprep.subr.mxu0 0.0
    %1604 = vmatpush2.msra.mxu0 0.0
    %1605 = vmatprep.subr.mxu0 0.0
    %1606 = vmatpush2.msra.mxu0 0.0
    %1607 = vmatprep.subr.mxu0 0.0
    %1608 = vmatpush2.msra.mxu0 0.0
    %1609 = vmatprep.subr.mxu0 0.0
    %1610 = vmatpush2.msra.mxu0 0.0
    %1611 = vmatprep.subr.mxu0 0.0
    %1612 = vmatpush2.msra.mxu0 0.0
    %1613 = vmatprep.subr.mxu0 0.0
    %1614 = vmatpush2.msra.mxu0 0.0
    %1615 = vmatprep.mubr.f32.mxu0 0.0
    %1616 = vmatmul.mubr.f32.gmra.mxu0 1.0
    %v1617 = vpop.f32.mrf.mxu0
    %v1618 = vadd.f32 0.0, %v1617
    %v1619 = vpop.f32.mrf.mxu0
    %1620 = vdwg.mxu0
    %v1621 = vmul.f32 %v1532, 0.0078125
    %v1622 = vmul.f32 %v1618, 0.0078125
    %v1623 = vmul.f32 %v1621, %v1621
    %v1624 = vsub.f32 %v1622, %v1623
    %v1625 = vadd.f32 %v1624, 1e-05
    %v1626 = vrsqrt.pop %v1625
    %v1627 = vmul.f32 %v1462, %v1626
    %v1628 = vmul.f32 %v1621, %v1627
    %v1629 = vsub.f32 %v1464, %v1628
    %v1631 = vlaneseq
    %v1632 = vshrl.u32 %v1631, 7
    %v1633 = vsub.s32 0, %v1632
    %v1634 = vrot.slane %v1627, %v1633
    %v1636 = vmul.f32 %v1383, %v1634
    %v1637 = vmul.f32 %v1388, %v1634
    %v1638 = vmul.f32 %v1393, %v1634
    %v1639 = vmul.f32 %v1398, %v1634
    %v1640 = vmul.f32 %v1403, %v1634
    %v1641 = vmul.f32 %v1408, %v1634
    %v1642 = vmul.f32 %v1413, %v1634
    %v1643 = vmul.f32 %v1418, %v1634
    %v1644 = vmul.f32 %v1423, %v1634
    %v1645 = vmul.f32 %v1428, %v1634
    %v1646 = vmul.f32 %v1433, %v1634
    %v1647 = vmul.f32 %v1438, %v1634
    %v1648 = vmul.f32 %v1443, %v1634
    %v1649 = vmul.f32 %v1448, %v1634
    %v1650 = vmul.f32 %v1453, %v1634
    %v1651 = vmul.f32 %v1458, %v1634
    %v1653 = vlaneseq
    %v1654 = vshrl.u32 %v1653, 7
    %v1655 = vsub.s32 0, %v1654
    %v1656 = vrot.slane %v1629, %v1655
    %v1658 = vadd.f32 %v1636, %v1656
    %v1659 = vadd.f32 %v1637, %v1656
    %v1660 = vadd.f32 %v1638, %v1656
    %v1661 = vadd.f32 %v1639, %v1656
    %v1662 = vadd.f32 %v1640, %v1656
    %v1663 = vadd.f32 %v1641, %v1656
    %v1664 = vadd.f32 %v1642, %v1656
    %v1665 = vadd.f32 %v1643, %v1656
    %v1666 = vadd.f32 %v1644, %v1656
    %v1667 = vadd.f32 %v1645, %v1656
    %v1668 = vadd.f32 %v1646, %v1656
    %v1669 = vadd.f32 %v1647, %v1656
    %v1670 = vadd.f32 %v1648, %v1656
    %v1671 = vadd.f32 %v1649, %v1656
    %v1672 = vadd.f32 %v1650, %v1656
    %v1673 = vadd.f32 %v1651, %v1656
    %v1674 = vmax.f32 %v1658, 0.0
    %v1675 = vmax.f32 %v1659, 0.0
    %v1676 = vmax.f32 %v1660, 0.0
    %v1677 = vmax.f32 %v1661, 0.0
    %v1678 = vmax.f32 %v1662, 0.0
    %v1679 = vmax.f32 %v1663, 0.0
    %v1680 = vmax.f32 %v1664, 0.0
    %v1681 = vmax.f32 %v1665, 0.0
    %v1682 = vmax.f32 %v1666, 0.0
    %v1683 = vmax.f32 %v1667, 0.0
    %v1684 = vmax.f32 %v1668, 0.0
    %v1685 = vmax.f32 %v1669, 0.0
    %v1686 = vmax.f32 %v1670, 0.0
    %v1687 = vmax.f32 %v1671, 0.0
    %v1688 = vmax.f32 %v1672, 0.0
    %v1689 = vmax.f32 %v1673, 0.0
    %v1690 = vadd.f32 %v1283, %v1674
    %v1691 = vadd.f32 %v1284, %v1675
    %v1692 = vadd.f32 %v1285, %v1676
    %v1693 = vadd.f32 %v1286, %v1677
    %v1694 = vadd.f32 %v1287, %v1678
    %v1695 = vadd.f32 %v1288, %v1679
    %v1696 = vadd.f32 %v1289, %v1680
    %v1697 = vadd.f32 %v1290, %v1681
    %v1698 = vadd.f32 %v1291, %v1682
    %v1699 = vadd.f32 %v1292, %v1683
    %v1700 = vadd.f32 %v1293, %v1684
    %v1701 = vadd.f32 %v1294, %v1685
    %v1702 = vadd.f32 %v1295, %v1686
    %v1703 = vadd.f32 %v1296, %v1687
    %v1704 = vadd.f32 %v1297, %v1688
    %v1705 = vadd.f32 %v1298, %v1689
    %s1706 = scalar_lea.vmem [#allocation2], 384
    %v1707 = vld [vmem:[%s1706] sm:$0xff]
    %v1708 = vld [vmem:[%s1706 + $0x8] sm:$0xff]
    %v1709 = vld [vmem:[%s1706 + $0x10] sm:$0xff]
    %v1710 = vld [vmem:[%s1706 + $0x18] sm:$0xff]
    %v1711 = vld [vmem:[%s1706 + $0x20] sm:$0xff]
    %v1712 = vld [vmem:[%s1706 + $0x28] sm:$0xff]
    %v1713 = vld [vmem:[%s1706 + $0x30] sm:$0xff]
    %v1714 = vld [vmem:[%s1706 + $0x38] sm:$0xff]
    %v1715 = vld [vmem:[%s1706 + $0x40] sm:$0xff]
    %v1716 = vld [vmem:[%s1706 + $0x48] sm:$0xff]
    %v1717 = vld [vmem:[%s1706 + $0x50] sm:$0xff]
    %v1718 = vld [vmem:[%s1706 + $0x58] sm:$0xff]
    %v1719 = vld [vmem:[%s1706 + $0x60] sm:$0xff]
    %v1720 = vld [vmem:[%s1706 + $0x68] sm:$0xff]
    %v1721 = vld [vmem:[%s1706 + $0x70] sm:$0xff]
    %v1722 = vld [vmem:[%s1706 + $0x78] sm:$0xff]
    %1723 = vmatprep.subr.mxu0 0.0
    %1724 = vmatpush1.msra.mxu0 %v1722
    %1725 = vmatprep.subr.mxu0 0.0
    %1726 = vmatpush1.msra.mxu0 %v1721
    %1727 = vmatprep.subr.mxu0 0.0
    %1728 = vmatpush1.msra.mxu0 %v1720
    %1729 = vmatprep.subr.mxu0 0.0
    %1730 = vmatpush1.msra.mxu0 %v1719
    %1731 = vmatprep.subr.mxu0 0.0
    %1732 = vmatpush1.msra.mxu0 %v1718
    %1733 = vmatprep.subr.mxu0 0.0
    %1734 = vmatpush1.msra.mxu0 %v1717
    %1735 = vmatprep.subr.mxu0 0.0
    %1736 = vmatpush1.msra.mxu0 %v1716
    %1737 = vmatprep.subr.mxu0 0.0
    %1738 = vmatpush1.msra.mxu0 %v1715
    %1739 = vmatprep.subr.mxu0 0.0
    %1740 = vmatpush1.msra.mxu0 %v1714
    %1741 = vmatprep.subr.mxu0 0.0
    %1742 = vmatpush1.msra.mxu0 %v1713
    %1743 = vmatprep.subr.mxu0 0.0
    %1744 = vmatpush1.msra.mxu0 %v1712
    %1745 = vmatprep.subr.mxu0 0.0
    %1746 = vmatpush1.msra.mxu0 %v1711
    %1747 = vmatprep.subr.mxu0 0.0
    %1748 = vmatpush1.msra.mxu0 %v1710
    %1749 = vmatprep.subr.mxu0 0.0
    %1750 = vmatpush1.msra.mxu0 %v1709
    %1751 = vmatprep.subr.mxu0 0.0
    %1752 = vmatpush1.msra.mxu0 %v1708
    %1753 = vmatprep.subr.mxu0 0.0
    %1754 = vmatpush1.msra.mxu0 %v1707
    %1755 = vmatprep.subr.mxu0 0.0
    %1756 = vmatpush2.msra.mxu0 0.0
    %1757 = vmatprep.subr.mxu0 0.0
    %1758 = vmatpush2.msra.mxu0 0.0
    %1759 = vmatprep.subr.mxu0 0.0
    %1760 = vmatpush2.msra.mxu0 0.0
    %1761 = vmatprep.subr.mxu0 0.0
    %1762 = vmatpush2.msra.mxu0 0.0
    %1763 = vmatprep.subr.mxu0 0.0
    %1764 = vmatpush2.msra.mxu0 0.0
    %1765 = vmatprep.subr.mxu0 0.0
    %1766 = vmatpush2.msra.mxu0 0.0
    %1767 = vmatprep.subr.mxu0 0.0
    %1768 = vmatpush2.msra.mxu0 0.0
    %1769 = vmatprep.subr.mxu0 0.0
    %1770 = vmatpush2.msra.mxu0 0.0
    %1771 = vmatprep.subr.mxu0 0.0
    %1772 = vmatpush2.msra.mxu0 0.0
    %1773 = vmatprep.subr.mxu0 0.0
    %1774 = vmatpush2.msra.mxu0 0.0
    %1775 = vmatprep.subr.mxu0 0.0
    %1776 = vmatpush2.msra.mxu0 0.0
    %1777 = vmatprep.subr.mxu0 0.0
    %1778 = vmatpush2.msra.mxu0 0.0
    %1779 = vmatprep.subr.mxu0 0.0
    %1780 = vmatpush2.msra.mxu0 0.0
    %1781 = vmatprep.subr.mxu0 0.0
    %1782 = vmatpush2.msra.mxu0 0.0
    %1783 = vmatprep.subr.mxu0 0.0
    %1784 = vmatpush2.msra.mxu0 0.0
    %1785 = vmatprep.subr.mxu0 0.0
    %1786 = vmatpush2.msra.mxu0 0.0
    %1787 = vmatprep.mubr.f32.mxu0 0.0
    %1788 = vmatmul.mubr.f32.gmra.mxu0 %v1690
    %v1789 = vpop.f32.mrf.mxu0
    %v1790 = vadd.f32 0.0, %v1789
    %v1791 = vpop.f32.mrf.mxu0
    %1792 = vmatprep.mubr.f32.mxu0 0.0
    %1793 = vmatmul.mubr.f32.gmra.mxu0 %v1691
    %v1794 = vpop.f32.mrf.mxu0
    %v1795 = vadd.f32 0.0, %v1794
    %v1796 = vpop.f32.mrf.mxu0
    %1797 = vmatprep.mubr.f32.mxu0 0.0
    %1798 = vmatmul.mubr.f32.gmra.mxu0 %v1692
    %v1799 = vpop.f32.mrf.mxu0
    %v1800 = vadd.f32 0.0, %v1799
    %v1801 = vpop.f32.mrf.mxu0
    %1802 = vmatprep.mubr.f32.mxu0 0.0
    %1803 = vmatmul.mubr.f32.gmra.mxu0 %v1693
    %v1804 = vpop.f32.mrf.mxu0
    %v1805 = vadd.f32 0.0, %v1804
    %v1806 = vpop.f32.mrf.mxu0
    %1807 = vmatprep.mubr.f32.mxu0 0.0
    %1808 = vmatmul.mubr.f32.gmra.mxu0 %v1694
    %v1809 = vpop.f32.mrf.mxu0
    %v1810 = vadd.f32 0.0, %v1809
    %v1811 = vpop.f32.mrf.mxu0
    %1812 = vmatprep.mubr.f32.mxu0 0.0
    %1813 = vmatmul.mubr.f32.gmra.mxu0 %v1695
    %v1814 = vpop.f32.mrf.mxu0
    %v1815 = vadd.f32 0.0, %v1814
    %v1816 = vpop.f32.mrf.mxu0
    %1817 = vmatprep.mubr.f32.mxu0 0.0
    %1818 = vmatmul.mubr.f32.gmra.mxu0 %v1696
    %v1819 = vpop.f32.mrf.mxu0
    %v1820 = vadd.f32 0.0, %v1819
    %v1821 = vpop.f32.mrf.mxu0
    %1822 = vmatprep.mubr.f32.mxu0 0.0
    %1823 = vmatmul.mubr.f32.gmra.mxu0 %v1697
    %v1824 = vpop.f32.mrf.mxu0
    %v1825 = vadd.f32 0.0, %v1824
    %v1826 = vpop.f32.mrf.mxu0
    %1827 = vmatprep.mubr.f32.mxu0 0.0
    %1828 = vmatmul.mubr.f32.gmra.mxu0 %v1698
    %v1829 = vpop.f32.mrf.mxu0
    %v1830 = vadd.f32 0.0, %v1829
    %v1831 = vpop.f32.mrf.mxu0
    %1832 = vmatprep.mubr.f32.mxu0 0.0
    %1833 = vmatmul.mubr.f32.gmra.mxu0 %v1699
    %v1834 = vpop.f32.mrf.mxu0
    %v1835 = vadd.f32 0.0, %v1834
    %v1836 = vpop.f32.mrf.mxu0
    %1837 = vmatprep.mubr.f32.mxu0 0.0
    %1838 = vmatmul.mubr.f32.gmra.mxu0 %v1700
    %v1839 = vpop.f32.mrf.mxu0
    %v1840 = vadd.f32 0.0, %v1839
    %v1841 = vpop.f32.mrf.mxu0
    %1842 = vmatprep.mubr.f32.mxu0 0.0
    %1843 = vmatmul.mubr.f32.gmra.mxu0 %v1701
    %v1844 = vpop.f32.mrf.mxu0
    %v1845 = vadd.f32 0.0, %v1844
    %v1846 = vpop.f32.mrf.mxu0
    %1847 = vmatprep.mubr.f32.mxu0 0.0
    %1848 = vmatmul.mubr.f32.gmra.mxu0 %v1702
    %v1849 = vpop.f32.mrf.mxu0
    %v1850 = vadd.f32 0.0, %v1849
    %v1851 = vpop.f32.mrf.mxu0
    %1852 = vmatprep.mubr.f32.mxu0 0.0
    %1853 = vmatmul.mubr.f32.gmra.mxu0 %v1703
    %v1854 = vpop.f32.mrf.mxu0
    %v1855 = vadd.f32 0.0, %v1854
    %v1856 = vpop.f32.mrf.mxu0
    %1857 = vmatprep.mubr.f32.mxu0 0.0
    %1858 = vmatmul.mubr.f32.gmra.mxu0 %v1704
    %v1859 = vpop.f32.mrf.mxu0
    %v1860 = vadd.f32 0.0, %v1859
    %v1861 = vpop.f32.mrf.mxu0
    %1862 = vmatprep.mubr.f32.mxu0 0.0
    %1863 = vmatmul.mubr.f32.gmra.mxu0 %v1705
    %v1864 = vpop.f32.mrf.mxu0
    %v1865 = vadd.f32 0.0, %v1864
    %v1866 = vpop.f32.mrf.mxu0
    %1867 = vdwg.mxu0
    %s1868 = scalar_lea.vmem %s5, 3
    %v1869 = vld [vmem:[%s1868] sm:$0x1]
    %s1870 = scalar_lea.vmem %s6, 3
    %v1871 = vld [vmem:[%s1870] sm:$0x1]
    %1872 = vmatprep.subr.mxu0 0.0
    %1873 = vmatpush1.msra.mxu0 %v1865
    %1874 = vmatprep.subr.mxu0 0.0
    %1875 = vmatpush1.msra.mxu0 %v1860
    %1876 = vmatprep.subr.mxu0 0.0
    %1877 = vmatpush1.msra.mxu0 %v1855
    %1878 = vmatprep.subr.mxu0 0.0
    %1879 = vmatpush1.msra.mxu0 %v1850
    %1880 = vmatprep.subr.mxu0 0.0
    %1881 = vmatpush1.msra.mxu0 %v1845
    %1882 = vmatprep.subr.mxu0 0.0
    %1883 = vmatpush1.msra.mxu0 %v1840
    %1884 = vmatprep.subr.mxu0 0.0
    %1885 = vmatpush1.msra.mxu0 %v1835
    %1886 = vmatprep.subr.mxu0 0.0
    %1887 = vmatpush1.msra.mxu0 %v1830
    %1888 = vmatprep.subr.mxu0 0.0
    %1889 = vmatpush1.msra.mxu0 %v1825
    %1890 = vmatprep.subr.mxu0 0.0
    %1891 = vmatpush1.msra.mxu0 %v1820
    %1892 = vmatprep.subr.mxu0 0.0
    %1893 = vmatpush1.msra.mxu0 %v1815
    %1894 = vmatprep.subr.mxu0 0.0
    %1895 = vmatpush1.msra.mxu0 %v1810
    %1896 = vmatprep.subr.mxu0 0.0
    %1897 = vmatpush1.msra.mxu0 %v1805
    %1898 = vmatprep.subr.mxu0 0.0
    %1899 = vmatpush1.msra.mxu0 %v1800
    %1900 = vmatprep.subr.mxu0 0.0
    %1901 = vmatpush1.msra.mxu0 %v1795
    %1902 = vmatprep.subr.mxu0 0.0
    %1903 = vmatpush1.msra.mxu0 %v1790
    %1904 = vmatprep.subr.mxu0 0.0
    %1905 = vmatpush2.msra.mxu0 0.0
    %1906 = vmatprep.subr.mxu0 0.0
    %1907 = vmatpush2.msra.mxu0 0.0
    %1908 = vmatprep.subr.mxu0 0.0
    %1909 = vmatpush2.msra.mxu0 0.0
    %1910 = vmatprep.subr.mxu0 0.0
    %1911 = vmatpush2.msra.mxu0 0.0
    %1912 = vmatprep.subr.mxu0 0.0
    %1913 = vmatpush2.msra.mxu0 0.0
    %1914 = vmatprep.subr.mxu0 0.0
    %1915 = vmatpush2.msra.mxu0 0.0
    %1916 = vmatprep.subr.mxu0 0.0
    %1917 = vmatpush2.msra.mxu0 0.0
    %1918 = vmatprep.subr.mxu0 0.0
    %1919 = vmatpush2.msra.mxu0 0.0
    %1920 = vmatprep.subr.mxu0 0.0
    %1921 = vmatpush2.msra.mxu0 0.0
    %1922 = vmatprep.subr.mxu0 0.0
    %1923 = vmatpush2.msra.mxu0 0.0
    %1924 = vmatprep.subr.mxu0 0.0
    %1925 = vmatpush2.msra.mxu0 0.0
    %1926 = vmatprep.subr.mxu0 0.0
    %1927 = vmatpush2.msra.mxu0 0.0
    %1928 = vmatprep.subr.mxu0 0.0
    %1929 = vmatpush2.msra.mxu0 0.0
    %1930 = vmatprep.subr.mxu0 0.0
    %1931 = vmatpush2.msra.mxu0 0.0
    %1932 = vmatprep.subr.mxu0 0.0
    %1933 = vmatpush2.msra.mxu0 0.0
    %1934 = vmatprep.subr.mxu0 0.0
    %1935 = vmatpush2.msra.mxu0 0.0
    %1936 = vmatprep.mubr.f32.mxu0 0.0
    %1937 = vmatmul.mubr.f32.gmra.mxu0 1.0
    %v1938 = vpop.f32.mrf.mxu0
    %v1939 = vadd.f32 0.0, %v1938
    %v1940 = vpop.f32.mrf.mxu0
    %1941 = vdwg.mxu0
    %v1942 = vmul.f32 %v1790, %v1790
    %v1943 = vmul.f32 %v1795, %v1795
    %v1944 = vmul.f32 %v1800, %v1800
    %v1945 = vmul.f32 %v1805, %v1805
    %v1946 = vmul.f32 %v1810, %v1810
    %v1947 = vmul.f32 %v1815, %v1815
    %v1948 = vmul.f32 %v1820, %v1820
    %v1949 = vmul.f32 %v1825, %v1825
    %v1950 = vmul.f32 %v1830, %v1830
    %v1951 = vmul.f32 %v1835, %v1835
    %v1952 = vmul.f32 %v1840, %v1840
    %v1953 = vmul.f32 %v1845, %v1845
    %v1954 = vmul.f32 %v1850, %v1850
    %v1955 = vmul.f32 %v1855, %v1855
    %v1956 = vmul.f32 %v1860, %v1860
    %v1957 = vmul.f32 %v1865, %v1865
    %1958 = vmatprep.subr.mxu0 0.0
    %1959 = vmatpush1.msra.mxu0 %v1957
    %1960 = vmatprep.subr.mxu0 0.0
    %1961 = vmatpush1.msra.mxu0 %v1956
    %1962 = vmatprep.subr.mxu0 0.0
    %1963 = vmatpush1.msra.mxu0 %v1955
    %1964 = vmatprep.subr.mxu0 0.0
    %1965 = vmatpush1.msra.mxu0 %v1954
    %1966 = vmatprep.subr.mxu0 0.0
    %1967 = vmatpush1.msra.mxu0 %v1953
    %1968 = vmatprep.subr.mxu0 0.0
    %1969 = vmatpush1.msra.mxu0 %v1952
    %1970 = vmatprep.subr.mxu0 0.0
    %1971 = vmatpush1.msra.mxu0 %v1951
    %1972 = vmatprep.subr.mxu0 0.0
    %1973 = vmatpush1.msra.mxu0 %v1950
    %1974 = vmatprep.subr.mxu0 0.0
    %1975 = vmatpush1.msra.mxu0 %v1949
    %1976 = vmatprep.subr.mxu0 0.0
    %1977 = vmatpush1.msra.mxu0 %v1948
    %1978 = vmatprep.subr.mxu0 0.0
    %1979 = vmatpush1.msra.mxu0 %v1947
    %1980 = vmatprep.subr.mxu0 0.0
    %1981 = vmatpush1.msra.mxu0 %v1946
    %1982 = vmatprep.subr.mxu0 0.0
    %1983 = vmatpush1.msra.mxu0 %v1945
    %1984 = vmatprep.subr.mxu0 0.0
    %1985 = vmatpush1.msra.mxu0 %v1944
    %1986 = vmatprep.subr.mxu0 0.0
    %1987 = vmatpush1.msra.mxu0 %v1943
    %1988 = vmatprep.subr.mxu0 0.0
    %1989 = vmatpush1.msra.mxu0 %v1942
    %1990 = vmatprep.subr.mxu0 0.0
    %1991 = vmatpush2.msra.mxu0 0.0
    %1992 = vmatprep.subr.mxu0 0.0
    %1993 = vmatpush2.msra.mxu0 0.0
    %1994 = vmatprep.subr.mxu0 0.0
    %1995 = vmatpush2.msra.mxu0 0.0
    %1996 = vmatprep.subr.mxu0 0.0
    %1997 = vmatpush2.msra.mxu0 0.0
    %1998 = vmatprep.subr.mxu0 0.0
    %1999 = vmatpush2.msra.mxu0 0.0
    %2000 = vmatprep.subr.mxu0 0.0
    %2001 = vmatpush2.msra.mxu0 0.0
    %2002 = vmatprep.subr.mxu0 0.0
    %2003 = vmatpush2.msra.mxu0 0.0
    %2004 = vmatprep.subr.mxu0 0.0
    %2005 = vmatpush2.msra.mxu0 0.0
    %2006 = vmatprep.subr.mxu0 0.0
    %2007 = vmatpush2.msra.mxu0 0.0
    %2008 = vmatprep.subr.mxu0 0.0
    %2009 = vmatpush2.msra.mxu0 0.0
    %2010 = vmatprep.subr.mxu0 0.0
    %2011 = vmatpush2.msra.mxu0 0.0
    %2012 = vmatprep.subr.mxu0 0.0
    %2013 = vmatpush2.msra.mxu0 0.0
    %2014 = vmatprep.subr.mxu0 0.0
    %2015 = vmatpush2.msra.mxu0 0.0
    %2016 = vmatprep.subr.mxu0 0.0
    %2017 = vmatpush2.msra.mxu0 0.0
    %2018 = vmatprep.subr.mxu0 0.0
    %2019 = vmatpush2.msra.mxu0 0.0
    %2020 = vmatprep.subr.mxu0 0.0
    %2021 = vmatpush2.msra.mxu0 0.0
    %2022 = vmatprep.mubr.f32.mxu0 0.0
    %2023 = vmatmul.mubr.f32.gmra.mxu0 1.0
    %v2024 = vpop.f32.mrf.mxu0
    %v2025 = vadd.f32 0.0, %v2024
    %v2026 = vpop.f32.mrf.mxu0
    %2027 = vdwg.mxu0
    %v2028 = vmul.f32 %v1939, 0.0078125
    %v2029 = vmul.f32 %v2025, 0.0078125
    %v2030 = vmul.f32 %v2028, %v2028
    %v2031 = vsub.f32 %v2029, %v2030
    %v2032 = vadd.f32 %v2031, 1e-05
    %v2033 = vrsqrt.pop %v2032
    %v2034 = vmul.f32 %v1869, %v2033
    %v2035 = vmul.f32 %v2028, %v2034
    %v2036 = vsub.f32 %v1871, %v2035
    %v2038 = vlaneseq
    %v2039 = vshrl.u32 %v2038, 7
    %v2040 = vsub.s32 0, %v2039
    %v2041 = vrot.slane %v2034, %v2040
    %v2043 = vmul.f32 %v1790, %v2041
    %v2044 = vmul.f32 %v1795, %v2041
    %v2045 = vmul.f32 %v1800, %v2041
    %v2046 = vmul.f32 %v1805, %v2041
    %v2047 = vmul.f32 %v1810, %v2041
    %v2048 = vmul.f32 %v1815, %v2041
    %v2049 = vmul.f32 %v1820, %v2041
    %v2050 = vmul.f32 %v1825, %v2041
    %v2051 = vmul.f32 %v1830, %v2041
    %v2052 = vmul.f32 %v1835, %v2041
    %v2053 = vmul.f32 %v1840, %v2041
    %v2054 = vmul.f32 %v1845, %v2041
    %v2055 = vmul.f32 %v1850, %v2041
    %v2056 = vmul.f32 %v1855, %v2041
    %v2057 = vmul.f32 %v1860, %v2041
    %v2058 = vmul.f32 %v1865, %v2041
    %v2060 = vlaneseq
    %v2061 = vshrl.u32 %v2060, 7
    %v2062 = vsub.s32 0, %v2061
    %v2063 = vrot.slane %v2036, %v2062
    %v2065 = vadd.f32 %v2043, %v2063
    %v2066 = vadd.f32 %v2044, %v2063
    %v2067 = vadd.f32 %v2045, %v2063
    %v2068 = vadd.f32 %v2046, %v2063
    %v2069 = vadd.f32 %v2047, %v2063
    %v2070 = vadd.f32 %v2048, %v2063
    %v2071 = vadd.f32 %v2049, %v2063
    %v2072 = vadd.f32 %v2050, %v2063
    %v2073 = vadd.f32 %v2051, %v2063
    %v2074 = vadd.f32 %v2052, %v2063
    %v2075 = vadd.f32 %v2053, %v2063
    %v2076 = vadd.f32 %v2054, %v2063
    %v2077 = vadd.f32 %v2055, %v2063
    %v2078 = vadd.f32 %v2056, %v2063
    %v2079 = vadd.f32 %v2057, %v2063
    %v2080 = vadd.f32 %v2058, %v2063
    %v2081 = vmax.f32 %v2065, 0.0
    %v2082 = vmax.f32 %v2066, 0.0
    %v2083 = vmax.f32 %v2067, 0.0
    %v2084 = vmax.f32 %v2068, 0.0
    %v2085 = vmax.f32 %v2069, 0.0
    %v2086 = vmax.f32 %v2070, 0.0
    %v2087 = vmax.f32 %v2071, 0.0
    %v2088 = vmax.f32 %v2072, 0.0
    %v2089 = vmax.f32 %v2073, 0.0
    %v2090 = vmax.f32 %v2074, 0.0
    %v2091 = vmax.f32 %v2075, 0.0
    %v2092 = vmax.f32 %v2076, 0.0
    %v2093 = vmax.f32 %v2077, 0.0
    %v2094 = vmax.f32 %v2078, 0.0
    %v2095 = vmax.f32 %v2079, 0.0
    %v2096 = vmax.f32 %v2080, 0.0
    %v2097 = vadd.f32 %v1690, %v2081
    %v2098 = vadd.f32 %v1691, %v2082
    %v2099 = vadd.f32 %v1692, %v2083
    %v2100 = vadd.f32 %v1693, %v2084
    %v2101 = vadd.f32 %v1694, %v2085
    %v2102 = vadd.f32 %v1695, %v2086
    %v2103 = vadd.f32 %v1696, %v2087
    %v2104 = vadd.f32 %v1697, %v2088
    %v2105 = vadd.f32 %v1698, %v2089
    %v2106 = vadd.f32 %v1699, %v2090
    %v2107 = vadd.f32 %v1700, %v2091
    %v2108 = vadd.f32 %v1701, %v2092
    %v2109 = vadd.f32 %v1702, %v2093
    %v2110 = vadd.f32 %v1703, %v2094
    %v2111 = vadd.f32 %v1704, %v2095
    %v2112 = vadd.f32 %v1705, %v2096
    %s2113 = scalar_lea.vmem [#allocation2], 512
    %v2114 = vld [vmem:[%s2113] sm:$0xff]
    %v2115 = vld [vmem:[%s2113 + $0x8] sm:$0xff]
    %v2116 = vld [vmem:[%s2113 + $0x10] sm:$0xff]
    %v2117 = vld [vmem:[%s2113 + $0x18] sm:$0xff]
    %v2118 = vld [vmem:[%s2113 + $0x20] sm:$0xff]
    %v2119 = vld [vmem:[%s2113 + $0x28] sm:$0xff]
    %v2120 = vld [vmem:[%s2113 + $0x30] sm:$0xff]
    %v2121 = vld [vmem:[%s2113 + $0x38] sm:$0xff]
    %v2122 = vld [vmem:[%s2113 + $0x40] sm:$0xff]
    %v2123 = vld [vmem:[%s2113 + $0x48] sm:$0xff]
    %v2124 = vld [vmem:[%s2113 + $0x50] sm:$0xff]
    %v2125 = vld [vmem:[%s2113 + $0x58] sm:$0xff]
    %v2126 = vld [vmem:[%s2113 + $0x60] sm:$0xff]
    %v2127 = vld [vmem:[%s2113 + $0x68] sm:$0xff]
    %v2128 = vld [vmem:[%s2113 + $0x70] sm:$0xff]
    %v2129 = vld [vmem:[%s2113 + $0x78] sm:$0xff]
    %2130 = vmatprep.subr.mxu0 0.0
    %2131 = vmatpush1.msra.mxu0 %v2129
    %2132 = vmatprep.subr.mxu0 0.0
    %2133 = vmatpush1.msra.mxu0 %v2128
    %2134 = vmatprep.subr.mxu0 0.0
    %2135 = vmatpush1.msra.mxu0 %v2127
    %2136 = vmatprep.subr.mxu0 0.0
    %2137 = vmatpush1.msra.mxu0 %v2126
    %2138 = vmatprep.subr.mxu0 0.0
    %2139 = vmatpush1.msra.mxu0 %v2125
    %2140 = vmatprep.subr.mxu0 0.0
    %2141 = vmatpush1.msra.mxu0 %v2124
    %2142 = vmatprep.subr.mxu0 0.0
    %2143 = vmatpush1.msra.mxu0 %v2123
    %2144 = vmatprep.subr.mxu0 0.0
    %2145 = vmatpush1.msra.mxu0 %v2122
    %2146 = vmatprep.subr.mxu0 0.0
    %2147 = vmatpush1.msra.mxu0 %v2121
    %2148 = vmatprep.subr.mxu0 0.0
    %2149 = vmatpush1.msra.mxu0 %v2120
    %2150 = vmatprep.subr.mxu0 0.0
    %2151 = vmatpush1.msra.mxu0 %v2119
    %2152 = vmatprep.subr.mxu0 0.0
    %2153 = vmatpush1.msra.mxu0 %v2118
    %2154 = vmatprep.subr.mxu0 0.0
    %2155 = vmatpush1.msra.mxu0 %v2117
    %2156 = vmatprep.subr.mxu0 0.0
    %2157 = vmatpush1.msra.mxu0 %v2116
    %2158 = vmatprep.subr.mxu0 0.0
    %2159 = vmatpush1.msra.mxu0 %v2115
    %2160 = vmatprep.subr.mxu0 0.0
    %2161 = vmatpush1.msra.mxu0 %v2114
    %2162 = vmatprep.subr.mxu0 0.0
    %2163 = vmatpush2.msra.mxu0 0.0
    %2164 = vmatprep.subr.mxu0 0.0
    %2165 = vmatpush2.msra.mxu0 0.0
    %2166 = vmatprep.subr.mxu0 0.0
    %2167 = vmatpush2.msra.mxu0 0.0
    %2168 = vmatprep.subr.mxu0 0.0
    %2169 = vmatpush2.msra.mxu0 0.0
    %2170 = vmatprep.subr.mxu0 0.0
    %2171 = vmatpush2.msra.mxu0 0.0
    %2172 = vmatprep.subr.mxu0 0.0
    %2173 = vmatpush2.msra.mxu0 0.0
    %2174 = vmatprep.subr.mxu0 0.0
    %2175 = vmatpush2.msra.mxu0 0.0
    %2176 = vmatprep.subr.mxu0 0.0
    %2177 = vmatpush2.msra.mxu0 0.0
    %2178 = vmatprep.subr.mxu0 0.0
    %2179 = vmatpush2.msra.mxu0 0.0
    %2180 = vmatprep.subr.mxu0 0.0
    %2181 = vmatpush2.msra.mxu0 0.0
    %2182 = vmatprep.subr.mxu0 0.0
    %2183 = vmatpush2.msra.mxu0 0.0
    %2184 = vmatprep.subr.mxu0 0.0
    %2185 = vmatpush2.msra.mxu0 0.0
    %2186 = vmatprep.subr.mxu0 0.0
    %2187 = vmatpush2.msra.mxu0 0.0
    %2188 = vmatprep.subr.mxu0 0.0
    %2189 = vmatpush2.msra.mxu0 0.0
    %2190 = vmatprep.subr.mxu0 0.0
    %2191 = vmatpush2.msra.mxu0 0.0
    %2192 = vmatprep.subr.mxu0 0.0
    %2193 = vmatpush2.msra.mxu0 0.0
    %2194 = vmatprep.mubr.f32.mxu0 0.0
    %2195 = vmatmul.mubr.f32.gmra.mxu0 %v2097
    %v2196 = vpop.f32.mrf.mxu0
    %v2197 = vadd.f32 0.0, %v2196
    %v2198 = vpop.f32.mrf.mxu0
    %2199 = vmatprep.mubr.f32.mxu0 0.0
    %2200 = vmatmul.mubr.f32.gmra.mxu0 %v2098
    %v2201 = vpop.f32.mrf.mxu0
    %v2202 = vadd.f32 0.0, %v2201
    %v2203 = vpop.f32.mrf.mxu0
    %2204 = vmatprep.mubr.f32.mxu0 0.0
    %2205 = vmatmul.mubr.f32.gmra.mxu0 %v2099
    %v2206 = vpop.f32.mrf.mxu0
    %v2207 = vadd.f32 0.0, %v2206
    %v2208 = vpop.f32.mrf.mxu0
    %2209 = vmatprep.mubr.f32.mxu0 0.0
    %2210 = vmatmul.mubr.f32.gmra.mxu0 %v2100
    %v2211 = vpop.f32.mrf.mxu0
    %v2212 = vadd.f32 0.0, %v2211
    %v2213 = vpop.f32.mrf.mxu0
    %2214 = vmatprep.mubr.f32.mxu0 0.0
    %2215 = vmatmul.mubr.f32.gmra.mxu0 %v2101
    %v2216 = vpop.f32.mrf.mxu0
    %v2217 = vadd.f32 0.0, %v2216
    %v2218 = vpop.f32.mrf.mxu0
    %2219 = vmatprep.mubr.f32.mxu0 0.0
    %2220 = vmatmul.mubr.f32.gmra.mxu0 %v2102
    %v2221 = vpop.f32.mrf.mxu0
    %v2222 = vadd.f32 0.0, %v2221
    %v2223 = vpop.f32.mrf.mxu0
    %2224 = vmatprep.mubr.f32.mxu0 0.0
    %2225 = vmatmul.mubr.f32.gmra.mxu0 %v2103
    %v2226 = vpop.f32.mrf.mxu0
    %v2227 = vadd.f32 0.0, %v2226
    %v2228 = vpop.f32.mrf.mxu0
    %2229 = vmatprep.mubr.f32.mxu0 0.0
    %2230 = vmatmul.mubr.f32.gmra.mxu0 %v2104
    %v2231 = vpop.f32.mrf.mxu0
    %v2232 = vadd.f32 0.0, %v2231
    %v2233 = vpop.f32.mrf.mxu0
    %2234 = vmatprep.mubr.f32.mxu0 0.0
    %2235 = vmatmul.mubr.f32.gmra.mxu0 %v2105
    %v2236 = vpop.f32.mrf.mxu0
    %v2237 = vadd.f32 0.0, %v2236
    %v2238 = vpop.f32.mrf.mxu0
    %2239 = vmatprep.mubr.f32.mxu0 0.0
    %2240 = vmatmul.mubr.f32.gmra.mxu0 %v2106
    %v2241 = vpop.f32.mrf.mxu0
    %v2242 = vadd.f32 0.0, %v2241
    %v2243 = vpop.f32.mrf.mxu0
    %2244 = vmatprep.mubr.f32.mxu0 0.0
    %2245 = vmatmul.mubr.f32.gmra.mxu0 %v2107
    %v2246 = vpop.f32.mrf.mxu0
    %v2247 = vadd.f32 0.0, %v2246
    %v2248 = vpop.f32.mrf.mxu0
    %2249 = vmatprep.mubr.f32.mxu0 0.0
    %2250 = vmatmul.mubr.f32.gmra.mxu0 %v2108
    %v2251 = vpop.f32.mrf.mxu0
    %v2252 = vadd.f32 0.0, %v2251
    %v2253 = vpop.f32.mrf.mxu0
    %2254 = vmatprep.mubr.f32.mxu0 0.0
    %2255 = vmatmul.mubr.f32.gmra.mxu0 %v2109
    %v2256 = vpop.f32.mrf.mxu0
    %v2257 = vadd.f32 0.0, %v2256
    %v2258 = vpop.f32.mrf.mxu0
    %2259 = vmatprep.mubr.f32.mxu0 0.0
    %2260 = vmatmul.mubr.f32.gmra.mxu0 %v2110
    %v2261 = vpop.f32.mrf.mxu0
    %v2262 = vadd.f32 0.0, %v2261
    %v2263 = vpop.f32.mrf.mxu0
    %2264 = vmatprep.mubr.f32.mxu0 0.0
    %2265 = vmatmul.mubr.f32.gmra.mxu0 %v2111
    %v2266 = vpop.f32.mrf.mxu0
    %v2267 = vadd.f32 0.0, %v2266
    %v2268 = vpop.f32.mrf.mxu0
    %2269 = vmatprep.mubr.f32.mxu0 0.0
    %2270 = vmatmul.mubr.f32.gmra.mxu0 %v2112
    %v2271 = vpop.f32.mrf.mxu0
    %v2272 = vadd.f32 0.0, %v2271
    %v2273 = vpop.f32.mrf.mxu0
    %2274 = vdwg.mxu0
    %s2275 = scalar_lea.vmem %s5, 4
    %v2276 = vld [vmem:[%s2275] sm:$0x1]
    %s2277 = scalar_lea.vmem %s6, 4
    %v2278 = vld [vmem:[%s2277] sm:$0x1]
    %2279 = vmatprep.subr.mxu0 0.0
    %2280 = vmatpush1.msra.mxu0 %v2272
    %2281 = vmatprep.subr.mxu0 0.0
    %2282 = vmatpush1.msra.mxu0 %v2267
    %2283 = vmatprep.subr.mxu0 0.0
    %2284 = vmatpush1.msra.mxu0 %v2262
    %2285 = vmatprep.subr.mxu0 0.0
    %2286 = vmatpush1.msra.mxu0 %v2257
    %2287 = vmatprep.subr.mxu0 0.0
    %2288 = vmatpush1.msra.mxu0 %v2252
    %2289 = vmatprep.subr.mxu0 0.0
    %2290 = vmatpush1.msra.mxu0 %v2247
    %2291 = vmatprep.subr.mxu0 0.0
    %2292 = vmatpush1.msra.mxu0 %v2242
    %2293 = vmatprep.subr.mxu0 0.0
    %2294 = vmatpush1.msra.mxu0 %v2237
    %2295 = vmatprep.subr.mxu0 0.0
    %2296 = vmatpush1.msra.mxu0 %v2232
    %2297 = vmatprep.subr.mxu0 0.0
    %2298 = vmatpush1.msra.mxu0 %v2227
    %2299 = vmatprep.subr.mxu0 0.0
    %2300 = vmatpush1.msra.mxu0 %v2222
    %2301 = vmatprep.subr.mxu0 0.0
    %2302 = vmatpush1.msra.mxu0 %v2217
    %2303 = vmatprep.subr.mxu0 0.0
    %2304 = vmatpush1.msra.mxu0 %v2212
    %2305 = vmatprep.subr.mxu0 0.0
    %2306 = vmatpush1.msra.mxu0 %v2207
    %2307 = vmatprep.subr.mxu0 0.0
    %2308 = vmatpush1.msra.mxu0 %v2202
    %2309 = vmatprep.subr.mxu0 0.0
    %2310 = vmatpush1.msra.mxu0 %v2197
    %2311 = vmatprep.subr.mxu0 0.0
    %2312 = vmatpush2.msra.mxu0 0.0
    %2313 = vmatprep.subr.mxu0 0.0
    %2314 = vmatpush2.msra.mxu0 0.0
    %2315 = vmatprep.subr.mxu0 0.0
    %2316 = vmatpush2.msra.mxu0 0.0
    %2317 = vmatprep.subr.mxu0 0.0
    %2318 = vmatpush2.msra.mxu0 0.0
    %2319 = vmatprep.subr.mxu0 0.0
    %2320 = vmatpush2.msra.mxu0 0.0
    %2321 = vmatprep.subr.mxu0 0.0
    %2322 = vmatpush2.msra.mxu0 0.0
    %2323 = vmatprep.subr.mxu0 0.0
    %2324 = vmatpush2.msra.mxu0 0.0
    %2325 = vmatprep.subr.mxu0 0.0
    %2326 = vmatpush2.msra.mxu0 0.0
    %2327 = vmatprep.subr.mxu0 0.0
    %2328 = vmatpush2.msra.mxu0 0.0
    %2329 = vmatprep.subr.mxu0 0.0
    %2330 = vmatpush2.msra.mxu0 0.0
    %2331 = vmatprep.subr.mxu0 0.0
    %2332 = vmatpush2.msra.mxu0 0.0
    %2333 = vmatprep.subr.mxu0 0.0
    %2334 = vmatpush2.msra.mxu0 0.0
    %2335 = vmatprep.subr.mxu0 0.0
    %2336 = vmatpush2.msra.mxu0 0.0
    %2337 = vmatprep.subr.mxu0 0.0
    %2338 = vmatpush2.msra.mxu0 0.0
    %2339 = vmatprep.subr.mxu0 0.0
    %2340 = vmatpush2.msra.mxu0 0.0
    %2341 = vmatprep.subr.mxu0 0.0
    %2342 = vmatpush2.msra.mxu0 0.0
    %2343 = vmatprep.mubr.f32.mxu0 0.0
    %2344 = vmatmul.mubr.f32.gmra.mxu0 1.0
    %v2345 = vpop.f32.mrf.mxu0
    %v2346 = vadd.f32 0.0, %v2345
    %v2347 = vpop.f32.mrf.mxu0
    %2348 = vdwg.mxu0
    %v2349 = vmul.f32 %v2197, %v2197
    %v2350 = vmul.f32 %v2202, %v2202
    %v2351 = vmul.f32 %v2207, %v2207
    %v2352 = vmul.f32 %v2212, %v2212
    %v2353 = vmul.f32 %v2217, %v2217
    %v2354 = vmul.f32 %v2222, %v2222
    %v2355 = vmul.f32 %v2227, %v2227
    %v2356 = vmul.f32 %v2232, %v2232
    %v2357 = vmul.f32 %v2237, %v2237
    %v2358 = vmul.f32 %v2242, %v2242
    %v2359 = vmul.f32 %v2247, %v2247
    %v2360 = vmul.f32 %v2252, %v2252
    %v2361 = vmul.f32 %v2257, %v2257
    %v2362 = vmul.f32 %v2262, %v2262
    %v2363 = vmul.f32 %v2267, %v2267
    %v2364 = vmul.f32 %v2272, %v2272
    %2365 = vmatprep.subr.mxu0 0.0
    %2366 = vmatpush1.msra.mxu0 %v2364
    %2367 = vmatprep.subr.mxu0 0.0
    %2368 = vmatpush1.msra.mxu0 %v2363
    %2369 = vmatprep.subr.mxu0 0.0
    %2370 = vmatpush1.msra.mxu0 %v2362
    %2371 = vmatprep.subr.mxu0 0.0
    %2372 = vmatpush1.msra.mxu0 %v2361
    %2373 = vmatprep.subr.mxu0 0.0
    %2374 = vmatpush1.msra.mxu0 %v2360
    %2375 = vmatprep.subr.mxu0 0.0
    %2376 = vmatpush1.msra.mxu0 %v2359
    %2377 = vmatprep.subr.mxu0 0.0
    %2378 = vmatpush1.msra.mxu0 %v2358
    %2379 = vmatprep.subr.mxu0 0.0
    %2380 = vmatpush1.msra.mxu0 %v2357
    %2381 = vmatprep.subr.mxu0 0.0
    %2382 = vmatpush1.msra.mxu0 %v2356
    %2383 = vmatprep.subr.mxu0 0.0
    %2384 = vmatpush1.msra.mxu0 %v2355
    %2385 = vmatprep.subr.mxu0 0.0
    %2386 = vmatpush1.msra.mxu0 %v2354
    %2387 = vmatprep.subr.mxu0 0.0
    %2388 = vmatpush1.msra.mxu0 %v2353
    %2389 = vmatprep.subr.mxu0 0.0
    %2390 = vmatpush1.msra.mxu0 %v2352
    %2391 = vmatprep.subr.mxu0 0.0
    %2392 = vmatpush1.msra.mxu0 %v2351
    %2393 = vmatprep.subr.mxu0 0.0
    %2394 = vmatpush1.msra.mxu0 %v2350
    %2395 = vmatprep.subr.mxu0 0.0
    %2396 = vmatpush1.msra.mxu0 %v2349
    %2397 = vmatprep.subr.mxu0 0.0
    %2398 = vmatpush2.msra.mxu0 0.0
    %2399 = vmatprep.subr.mxu0 0.0
    %2400 = vmatpush2.msra.mxu0 0.0
    %2401 = vmatprep.subr.mxu0 0.0
    %2402 = vmatpush2.msra.mxu0 0.0
    %2403 = vmatprep.subr.mxu0 0.0
    %2404 = vmatpush2.msra.mxu0 0.0
    %2405 = vmatprep.subr.mxu0 0.0
    %2406 = vmatpush2.msra.mxu0 0.0
    %2407 = vmatprep.subr.mxu0 0.0
    %2408 = vmatpush2.msra.mxu0 0.0
    %2409 = vmatprep.subr.mxu0 0.0
    %2410 = vmatpush2.msra.mxu0 0.0
    %2411 = vmatprep.subr.mxu0 0.0
    %2412 = vmatpush2.msra.mxu0 0.0
    %2413 = vmatprep.subr.mxu0 0.0
    %2414 = vmatpush2.msra.mxu0 0.0
    %2415 = vmatprep.subr.mxu0 0.0
    %2416 = vmatpush2.msra.mxu0 0.0
    %2417 = vmatprep.subr.mxu0 0.0
    %2418 = vmatpush2.msra.mxu0 0.0
    %2419 = vmatprep.subr.mxu0 0.0
    %2420 = vmatpush2.msra.mxu0 0.0
    %2421 = vmatprep.subr.mxu0 0.0
    %2422 = vmatpush2.msra.mxu0 0.0
    %2423 = vmatprep.subr.mxu0 0.0
    %2424 = vmatpush2.msra.mxu0 0.0
    %2425 = vmatprep.subr.mxu0 0.0
    %2426 = vmatpush2.msra.mxu0 0.0
    %2427 = vmatprep.subr.mxu0 0.0
    %2428 = vmatpush2.msra.mxu0 0.0
    %2429 = vmatprep.mubr.f32.mxu0 0.0
    %2430 = vmatmul.mubr.f32.gmra.mxu0 1.0
    %v2431 = vpop.f32.mrf.mxu0
    %v2432 = vadd.f32 0.0, %v2431
    %v2433 = vpop.f32.mrf.mxu0
    %2434 = vdwg.mxu0
    %v2435 = vmul.f32 %v2346, 0.0078125
    %v2436 = vmul.f32 %v2432, 0.0078125
    %v2437 = vmul.f32 %v2435, %v2435
    %v2438 = vsub.f32 %v2436, %v2437
    %v2439 = vadd.f32 %v2438, 1e-05
    %v2440 = vrsqrt.pop %v2439
    %v2441 = vmul.f32 %v2276, %v2440
    %v2442 = vmul.f32 %v2435, %v2441
    %v2443 = vsub.f32 %v2278, %v2442
    %v2445 = vlaneseq
    %v2446 = vshrl.u32 %v2445, 7
    %v2447 = vsub.s32 0, %v2446
    %v2448 = vrot.slane %v2441, %v2447
    %v2450 = vmul.f32 %v2197, %v2448
    %v2451 = vmul.f32 %v2202, %v2448
    %v2452 = vmul.f32 %v2207, %v2448
    %v2453 = vmul.f32 %v2212, %v2448
    %v2454 = vmul.f32 %v2217, %v2448
    %v2455 = vmul.f32 %v2222, %v2448
    %v2456 = vmul.f32 %v2227, %v2448
    %v2457 = vmul.f32 %v2232, %v2448
    %v2458 = vmul.f32 %v2237, %v2448
    %v2459 = vmul.f32 %v2242, %v2448
    %v2460 = vmul.f32 %v2247, %v2448
    %v2461 = vmul.f32 %v2252, %v2448
    %v2462 = vmul.f32 %v2257, %v2448
    %v2463 = vmul.f32 %v2262, %v2448
    %v2464 = vmul.f32 %v2267, %v2448
    %v2465 = vmul.f32 %v2272, %v2448
    %v2467 = vlaneseq
    %v2468 = vshrl.u32 %v2467, 7
    %v2469 = vsub.s32 0, %v2468
    %v2470 = vrot.slane %v2443, %v2469
    %v2472 = vadd.f32 %v2450, %v2470
    %v2473 = vadd.f32 %v2451, %v2470
    %v2474 = vadd.f32 %v2452, %v2470
    %v2475 = vadd.f32 %v2453, %v2470
    %v2476 = vadd.f32 %v2454, %v2470
    %v2477 = vadd.f32 %v2455, %v2470
    %v2478 = vadd.f32 %v2456, %v2470
    %v2479 = vadd.f32 %v2457, %v2470
    %v2480 = vadd.f32 %v2458, %v2470
    %v2481 = vadd.f32 %v2459, %v2470
    %v2482 = vadd.f32 %v2460, %v2470
    %v2483 = vadd.f32 %v2461, %v2470
    %v2484 = vadd.f32 %v2462, %v2470
    %v2485 = vadd.f32 %v2463, %v2470
    %v2486 = vadd.f32 %v2464, %v2470
    %v2487 = vadd.f32 %v2465, %v2470
    %v2488 = vmax.f32 %v2472, 0.0
    %v2489 = vmax.f32 %v2473, 0.0
    %v2490 = vmax.f32 %v2474, 0.0
    %v2491 = vmax.f32 %v2475, 0.0
    %v2492 = vmax.f32 %v2476, 0.0
    %v2493 = vmax.f32 %v2477, 0.0
    %v2494 = vmax.f32 %v2478, 0.0
    %v2495 = vmax.f32 %v2479, 0.0
    %v2496 = vmax.f32 %v2480, 0.0
    %v2497 = vmax.f32 %v2481, 0.0
    %v2498 = vmax.f32 %v2482, 0.0
    %v2499 = vmax.f32 %v2483, 0.0
    %v2500 = vmax.f32 %v2484, 0.0
    %v2501 = vmax.f32 %v2485, 0.0
    %v2502 = vmax.f32 %v2486, 0.0
    %v2503 = vmax.f32 %v2487, 0.0
    %v2504 = vadd.f32 %v2097, %v2488
    %v2505 = vadd.f32 %v2098, %v2489
    %v2506 = vadd.f32 %v2099, %v2490
    %v2507 = vadd.f32 %v2100, %v2491
    %v2508 = vadd.f32 %v2101, %v2492
    %v2509 = vadd.f32 %v2102, %v2493
    %v2510 = vadd.f32 %v2103, %v2494
    %v2511 = vadd.f32 %v2104, %v2495
    %v2512 = vadd.f32 %v2105, %v2496
    %v2513 = vadd.f32 %v2106, %v2497
    %v2514 = vadd.f32 %v2107, %v2498
    %v2515 = vadd.f32 %v2108, %v2499
    %v2516 = vadd.f32 %v2109, %v2500
    %v2517 = vadd.f32 %v2110, %v2501
    %v2518 = vadd.f32 %v2111, %v2502
    %v2519 = vadd.f32 %v2112, %v2503
    %v2520 = vld [vmem:[%s7] sm:$0xff]
    %v2521 = vld [vmem:[%s7 + $0x8] sm:$0xff]
    %v2522 = vld [vmem:[%s7 + $0x10] sm:$0xff]
    %v2523 = vld [vmem:[%s7 + $0x18] sm:$0xff]
    %v2524 = vld [vmem:[%s7 + $0x20] sm:$0xff]
    %v2525 = vld [vmem:[%s7 + $0x28] sm:$0xff]
    %v2526 = vld [vmem:[%s7 + $0x30] sm:$0xff]
    %v2527 = vld [vmem:[%s7 + $0x38] sm:$0xff]
    %v2528 = vld [vmem:[%s7 + $0x40] sm:$0xff]
    %v2529 = vld [vmem:[%s7 + $0x48] sm:$0xff]
    %v2530 = vld [vmem:[%s7 + $0x50] sm:$0xff]
    %v2531 = vld [vmem:[%s7 + $0x58] sm:$0xff]
    %v2532 = vld [vmem:[%s7 + $0x60] sm:$0xff]
    %v2533 = vld [vmem:[%s7 + $0x68] sm:$0xff]
    %v2534 = vld [vmem:[%s7 + $0x70] sm:$0xff]
    %v2535 = vld [vmem:[%s7 + $0x78] sm:$0xff]
    %v2536 = vld [vmem:[%s8] sm:$0x1]
    %v2538 = vlaneseq
    %v2539 = vshrl.u32 %v2538, 7
    %v2540 = vsub.s32 0, %v2539
    %v2541 = vrot.slane %v2536, %v2540
    %2543 = vmatprep.subr.mxu0 0.0
    %2544 = vmatpush1.msra.mxu0 %v2535
    %2545 = vmatprep.subr.mxu0 0.0
    %2546 = vmatpush1.msra.mxu0 %v2534
    %2547 = vmatprep.subr.mxu0 0.0
    %2548 = vmatpush1.msra.mxu0 %v2533
    %2549 = vmatprep.subr.mxu0 0.0
    %2550 = vmatpush1.msra.mxu0 %v2532
    %2551 = vmatprep.subr.mxu0 0.0
    %2552 = vmatpush1.msra.mxu0 %v2531
    %2553 = vmatprep.subr.mxu0 0.0
    %2554 = vmatpush1.msra.mxu0 %v2530
    %2555 = vmatprep.subr.mxu0 0.0
    %2556 = vmatpush1.msra.mxu0 %v2529
    %2557 = vmatprep.subr.mxu0 0.0
    %2558 = vmatpush1.msra.mxu0 %v2528
    %2559 = vmatprep.subr.mxu0 0.0
    %2560 = vmatpush1.msra.mxu0 %v2527
    %2561 = vmatprep.subr.mxu0 0.0
    %2562 = vmatpush1.msra.mxu0 %v2526
    %2563 = vmatprep.subr.mxu0 0.0
    %2564 = vmatpush1.msra.mxu0 %v2525
    %2565 = vmatprep.subr.mxu0 0.0
    %2566 = vmatpush1.msra.mxu0 %v2524
    %2567 = vmatprep.subr.mxu0 0.0
    %2568 = vmatpush1.msra.mxu0 %v2523
    %2569 = vmatprep.subr.mxu0 0.0
    %2570 = vmatpush1.msra.mxu0 %v2522
    %2571 = vmatprep.subr.mxu0 0.0
    %2572 = vmatpush1.msra.mxu0 %v2521
    %2573 = vmatprep.subr.mxu0 0.0
    %2574 = vmatpush1.msra.mxu0 %v2520
    %2575 = vmatprep.subr.mxu0 0.0
    %2576 = vmatpush2.msra.mxu0 0.0
    %2577 = vmatprep.subr.mxu0 0.0
    %2578 = vmatpush2.msra.mxu0 0.0
    %2579 = vmatprep.subr.mxu0 0.0
    %2580 = vmatpush2.msra.mxu0 0.0
    %2581 = vmatprep.subr.mxu0 0.0
    %2582 = vmatpush2.msra.mxu0 0.0
    %2583 = vmatprep.subr.mxu0 0.0
    %2584 = vmatpush2.msra.mxu0 0.0
    %2585 = vmatprep.subr.mxu0 0.0
    %2586 = vmatpush2.msra.mxu0 0.0
    %2587 = vmatprep.subr.mxu0 0.0
    %2588 = vmatpush2.msra.mxu0 0.0
    %2589 = vmatprep.subr.mxu0 0.0
    %2590 = vmatpush2.msra.mxu0 0.0
    %2591 = vmatprep.subr.mxu0 0.0
    %2592 = vmatpush2.msra.mxu0 0.0
    %2593 = vmatprep.subr.mxu0 0.0
    %2594 = vmatpush2.msra.mxu0 0.0
    %2595 = vmatprep.subr.mxu0 0.0
    %2596 = vmatpush2.msra.mxu0 0.0
    %2597 = vmatprep.subr.mxu0 0.0
    %2598 = vmatpush2.msra.mxu0 0.0
    %2599 = vmatprep.subr.mxu0 0.0
    %2600 = vmatpush2.msra.mxu0 0.0
    %2601 = vmatprep.subr.mxu0 0.0
    %2602 = vmatpush2.msra.mxu0 0.0
    %2603 = vmatprep.subr.mxu0 0.0
    %2604 = vmatpush2.msra.mxu0 0.0
    %2605 = vmatprep.subr.mxu0 0.0
    %2606 = vmatpush2.msra.mxu0 0.0
    %2607 = vmatprep.mubr.f32.mxu0 0.0
    %2608 = vmatmul.mubr.f32.gmra.mxu0 %v2504
    %v2609 = vpop.f32.mrf.mxu0
    %v2610 = vadd.f32 %v2541, %v2609
    %v2611 = vpop.f32.mrf.mxu0
    %2612 = vmatprep.mubr.f32.mxu0 0.0
    %2613 = vmatmul.mubr.f32.gmra.mxu0 %v2505
    %v2614 = vpop.f32.mrf.mxu0
    %v2615 = vadd.f32 %v2541, %v2614
    %v2616 = vpop.f32.mrf.mxu0
    %2617 = vmatprep.mubr.f32.mxu0 0.0
    %2618 = vmatmul.mubr.f32.gmra.mxu0 %v2506
    %v2619 = vpop.f32.mrf.mxu0
    %v2620 = vadd.f32 %v2541, %v2619
    %v2621 = vpop.f32.mrf.mxu0
    %2622 = vmatprep.mubr.f32.mxu0 0.0
    %2623 = vmatmul.mubr.f32.gmra.mxu0 %v2507
    %v2624 = vpop.f32.mrf.mxu0
    %v2625 = vadd.f32 %v2541, %v2624
    %v2626 = vpop.f32.mrf.mxu0
    %2627 = vmatprep.mubr.f32.mxu0 0.0
    %2628 = vmatmul.mubr.f32.gmra.mxu0 %v2508
    %v2629 = vpop.f32.mrf.mxu0
    %v2630 = vadd.f32 %v2541, %v2629
    %v2631 = vpop.f32.mrf.mxu0
    %2632 = vmatprep.mubr.f32.mxu0 0.0
    %2633 = vmatmul.mubr.f32.gmra.mxu0 %v2509
    %v2634 = vpop.f32.mrf.mxu0
    %v2635 = vadd.f32 %v2541, %v2634
    %v2636 = vpop.f32.mrf.mxu0
    %2637 = vmatprep.mubr.f32.mxu0 0.0
    %2638 = vmatmul.mubr.f32.gmra.mxu0 %v2510
    %v2639 = vpop.f32.mrf.mxu0
    %v2640 = vadd.f32 %v2541, %v2639
    %v2641 = vpop.f32.mrf.mxu0
    %2642 = vmatprep.mubr.f32.mxu0 0.0
    %2643 = vmatmul.mubr.f32.gmra.mxu0 %v2511
    %v2644 = vpop.f32.mrf.mxu0
    %v2645 = vadd.f32 %v2541, %v2644
    %v2646 = vpop.f32.mrf.mxu0
    %2647 = vmatprep.mubr.f32.mxu0 0.0
    %2648 = vmatmul.mubr.f32.gmra.mxu0 %v2512
    %v2649 = vpop.f32.mrf.mxu0
    %v2650 = vadd.f32 %v2541, %v2649
    %v2651 = vpop.f32.mrf.mxu0
    %2652 = vmatprep.mubr.f32.mxu0 0.0
    %2653 = vmatmul.mubr.f32.gmra.mxu0 %v2513
    %v2654 = vpop.f32.mrf.mxu0
    %v2655 = vadd.f32 %v2541, %v2654
    %v2656 = vpop.f32.mrf.mxu0
    %2657 = vmatprep.mubr.f32.mxu0 0.0
    %2658 = vmatmul.mubr.f32.gmra.mxu0 %v2514
    %v2659 = vpop.f32.mrf.mxu0
    %v2660 = vadd.f32 %v2541, %v2659
    %v2661 = vpop.f32.mrf.mxu0
    %2662 = vmatprep.mubr.f32.mxu0 0.0
    %2663 = vmatmul.mubr.f32.gmra.mxu0 %v2515
    %v2664 = vpop.f32.mrf.mxu0
    %v2665 = vadd.f32 %v2541, %v2664
    %v2666 = vpop.f32.mrf.mxu0
    %2667 = vmatprep.mubr.f32.mxu0 0.0
    %2668 = vmatmul.mubr.f32.gmra.mxu0 %v2516
    %v2669 = vpop.f32.mrf.mxu0
    %v2670 = vadd.f32 %v2541, %v2669
    %v2671 = vpop.f32.mrf.mxu0
    %2672 = vmatprep.mubr.f32.mxu0 0.0
    %2673 = vmatmul.mubr.f32.gmra.mxu0 %v2517
    %v2674 = vpop.f32.mrf.mxu0
    %v2675 = vadd.f32 %v2541, %v2674
    %v2676 = vpop.f32.mrf.mxu0
    %2677 = vmatprep.mubr.f32.mxu0 0.0
    %2678 = vmatmul.mubr.f32.gmra.mxu0 %v2518
    %v2679 = vpop.f32.mrf.mxu0
    %v2680 = vadd.f32 %v2541, %v2679
    %v2681 = vpop.f32.mrf.mxu0
    %2682 = vmatprep.mubr.f32.mxu0 0.0
    %2683 = vmatmul.mubr.f32.gmra.mxu0 %v2519
    %v2684 = vpop.f32.mrf.mxu0
    %v2685 = vadd.f32 %v2541, %v2684
    %v2686 = vpop.f32.mrf.mxu0
    %2687 = vdwg.mxu0
    %2688 = vst [vmem:[#allocation5] sm:$0xff] %v2610
    %2689 = vst [vmem:[#allocation5 + $0x8] sm:$0xff] %v2615
    %2690 = vst [vmem:[#allocation5 + $0x10] sm:$0xff] %v2620
    %2691 = vst [vmem:[#allocation5 + $0x18] sm:$0xff] %v2625
    %2692 = vst [vmem:[#allocation5 + $0x20] sm:$0xff] %v2630
    %2693 = vst [vmem:[#allocation5 + $0x28] sm:$0xff] %v2635
    %2694 = vst [vmem:[#allocation5 + $0x30] sm:$0xff] %v2640
    %2695 = vst [vmem:[#allocation5 + $0x38] sm:$0xff] %v2645
    %2696 = vst [vmem:[#allocation5 + $0x40] sm:$0xff] %v2650
    %2697 = vst [vmem:[#allocation5 + $0x48] sm:$0xff] %v2655
    %2698 = vst [vmem:[#allocation5 + $0x50] sm:$0xff] %v2660
    %2699 = vst [vmem:[#allocation5 + $0x58] sm:$0xff] %v2665
    %2700 = vst [vmem:[#allocation5 + $0x60] sm:$0xff] %v2670
    %2701 = vst [vmem:[#allocation5 + $0x68] sm:$0xff] %v2675
    %2702 = vst [vmem:[#allocation5 + $0x70] sm:$0xff] %v2680
    %2703 = vst [vmem:[#allocation5 + $0x78] sm:$0xff] %v2685
    // Predicated region
    $region42: #{tpu_custom_call.1} parent=1 // pred_check
      _
    $region43: #{tpu_custom_call.1} parent=1 // pred_check_branch
      %2705 = sbr.rel (0) target = $region45
    $region44: #{tpu_custom_call.1} parent=1 // pred_region
      %s2707 = ssub.s32 2048, 2048
      %2708 = vsyncadd [#allocation4], %s2707
      %s2709 = sshll.u32 [#allocation5], 4
      %s2710 = int_to_ptr.vmem [resolvable:$true] %s2709
      %2715 = dma.vmem_to_hbm [thread:$0]  %s2710, 2048, %s9, [#allocation4], 128, 128, 8
    $region45: #{tpu_custom_call.1} parent=1 // pred_fallthru
      _
    // Predicated region
    $region46: #{tpu_custom_call.1} parent=1 // pred_check
      _
    $region47: #{tpu_custom_call.1} parent=1 // pred_check_branch
      %2717 = sbr.rel (0) target = $region49
    $region48: #{tpu_custom_call.1} parent=1 // pred_region
      %2718 = dma.done [#allocation4], 2048
    $region49: #{tpu_custom_call.1} parent=1 // pred_fallthru
      _
    %2719 = vsyncpa [#allocation3], 1
    %2720 = vsyncpa [#allocation4], 1

</llo_original>
